<compile_context>
chip_gen: v5e
topology: v5e:2x2
jax: 0.10.0
libtpu: 0.0.40
codegen_flags: <defaults>
</compile_context>

<pallas_src>
import functools
import math

import jax
import jax.numpy as jnp
from jax import lax
from jax.experimental import pallas as pl
from jax.experimental.pallas import tpu as pltpu


def _encoder_kernel(x_ref, *refs, num_layers, t_blk, t_last, num_chunks,
                    b_pad, hidden, unroll):
    """All LSTM layers fused; grid=(num_chunks,) iterates serially over time chunks.

    x_ref:        (t_blk*B_pad, D_in) chunk of time-major, batch-padded, flattened input
    per layer:    w_ih (d_in,4H), w_hh (H,4H), bias (1,4H)   gate order (i,f,g,o), b = b_ih+b_hh
    states_out:   (t_blk*B_pad, H)   last layer's per-timestep hidden states for this chunk
    h_out, c_out: (L, B_pad, H)      final states (written at last chunk)
    gx_scr:       (t_blk*B_pad, 4H)  hoisted input projection for the current layer
    h_scr, c_scr: (L, B_pad, H)      per-layer h/c carried across chunks
    st_bufs:      0/1/2 VMEM buffers (t_blk*B_pad, H) for inter-layer states (never hit HBM)
    """
    n_w = 3 * num_layers
    w_refs = refs[:n_w]
    states_out_ref, h_out_ref, c_out_ref = refs[n_w:n_w + 3]
    scratch = refs[n_w + 3:]
    gx_scr, h_scr, c_scr = scratch[0], scratch[1], scratch[2]
    st_bufs = scratch[3:]

    H = hidden
    B = b_pad
    chunk = pl.program_id(0)

    @pl.when(chunk == 0)
    def _():
        h_scr[...] = jnp.zeros_like(h_scr)
        c_scr[...] = jnp.zeros_like(c_scr)

    def layer_pass(layer, src_ref, dst_ref, n_steps):
        w_ih = w_refs[3 * layer][...]
        w_hh = w_refs[3 * layer + 1][...]
        b = w_refs[3 * layer + 2][...]

        # Chunk prologue: input projection for every timestep of the chunk in ONE MXU
        # matmul, hoisted off the serial recurrence.
        gx_scr[...] = (jnp.dot(src_ref[...], w_ih,
                               preferred_element_type=jnp.float32) + b)

        def step(t, carry):
            h, c = carry
            row = pl.multiple_of(t * B, B)          # B_pad is a multiple of 8 -> aligned
            # Single fused gate matmul on the serial path: (B,H) x (H,4H) -> (B,4H=128)
            g = gx_scr[pl.ds(row, B), :] + jnp.dot(
                h, w_hh, preferred_element_type=jnp.float32)
            # Full-lane-width activations (2 EUP passes over 128 lanes), then static slices.
            sg = jax.nn.sigmoid(g)
            tg = jnp.tanh(g)
            i_g = sg[:, 0 * H:1 * H]
            f_g = sg[:, 1 * H:2 * H]
            g_g = tg[:, 2 * H:3 * H]
            o_g = sg[:, 3 * H:4 * H]
            c_new = f_g * c + i_g * g_g
            h_new = o_g * jnp.tanh(c_new)
            dst_ref[pl.ds(row, B), :] = h_new.astype(dst_ref.dtype)
            return (h_new, c_new)

        h_n, c_n = lax.fori_loop(0, n_steps, step, (h_scr[layer], c_scr[layer]),
                                 unroll=min(n_steps, unroll))
        h_scr[layer] = h_n
        c_scr[layer] = c_n

    for layer in range(num_layers):
        src = x_ref if layer == 0 else st_bufs[(layer - 1) % len(st_bufs)]
        dst = (states_out_ref if layer == num_layers - 1
               else st_bufs[layer % len(st_bufs)])
        if t_last == t_blk:
            # T divides evenly into chunks (covers the single-chunk case too).
            layer_pass(layer, src, dst, t_blk)
        else:
            # Only the last chunk pays the shorter (static) trip count; no per-step masking.
            @pl.when(chunk != num_chunks - 1)
            def _(layer=layer, src=src, dst=dst):
                layer_pass(layer, src, dst, t_blk)

            @pl.when(chunk == num_chunks - 1)
            def _(layer=layer, src=src, dst=dst):
                layer_pass(layer, src, dst, t_last)

    @pl.when(chunk == num_chunks - 1)
    def _():
        h_out_ref[...] = h_scr[...].astype(h_out_ref.dtype)
        c_out_ref[...] = c_scr[...].astype(c_out_ref.dtype)


def init_encoder_params(key, input_size, hidden_size, num_layers, dtype=jnp.float32):
    """PyTorch-style init, stored fused/transposed:
    W_ih (D_in, 4H), W_hh (H, 4H), bias (1, 4H), gate order (i, f, g, o), bias = b_ih+b_hh."""
    params = []
    k = 1.0 / math.sqrt(hidden_size)
    for layer in range(num_layers):
        d_in = input_size if layer == 0 else hidden_size
        key, k1, k2, k3, k4 = jax.random.split(key, 5)
        w_ih = jax.random.uniform(k1, (d_in, 4 * hidden_size), dtype, -k, k)
        w_hh = jax.random.uniform(k2, (hidden_size, 4 * hidden_size), dtype, -k, k)
        b_ih = jax.random.uniform(k3, (1, 4 * hidden_size), dtype, -k, k)
        b_hh = jax.random.uniform(k4, (1, 4 * hidden_size), dtype, -k, k)
        params.append((w_ih, w_hh, b_ih + b_hh))
    return params


def encoder_forward(x, params, *, chunk_timesteps=256, unroll=16):
    """x: (B, T, input_size) batch-first, like the PyTorch module.
    Returns (encoder_states (B,T,H), hidden (L,B,H), cell (L,B,H))."""
    B, T, D = x.shape
    H = params[0][1].shape[0]
    L = len(params)
    dtype = x.dtype

    b_pad = max(8, ((B + 7) // 8) * 8)           # sublane-align per-timestep slices
    t_blk = min(T, chunk_timesteps)
    num_chunks = -(-T // t_blk)
    t_pad = num_chunks * t_blk
    t_last = T - (num_chunks - 1) * t_blk        # static trip count of the last chunk

    x_tm = jnp.transpose(x, (1, 0, 2))           # (T, B, D) time-major
    x_tm = jnp.pad(x_tm, ((0, t_pad - T), (0, b_pad - B), (0, 0)))
    x2d = x_tm.reshape(t_pad * b_pad, D)         # (T_pad*B_pad, D)

    flat_w = [w for triple in params for w in triple]

    in_specs = [pl.BlockSpec((t_blk * b_pad, D), lambda c: (c, 0))]
    for (w_ih, w_hh, bias) in params:
        in_specs += [
            pl.BlockSpec(w_ih.shape, lambda c: (0, 0)),
            pl.BlockSpec(w_hh.shape, lambda c: (0, 0)),
            pl.BlockSpec(bias.shape, lambda c: (0, 0)),
        ]

    out_specs = [
        pl.BlockSpec((t_blk * b_pad, H), lambda c: (c, 0)),
        pl.BlockSpec((L, b_pad, H), lambda c: (0, 0, 0)),
        pl.BlockSpec((L, b_pad, H), lambda c: (0, 0, 0)),
    ]
    out_shapes = (
        jax.ShapeDtypeStruct((t_pad * b_pad, H), dtype),
        jax.ShapeDtypeStruct((L, b_pad, H), dtype),
        jax.ShapeDtypeStruct((L, b_pad, H), dtype),
    )

    n_bufs = 0 if L == 1 else (1 if L == 2 else 2)
    scratch_shapes = [
        pltpu.VMEM((t_blk * b_pad, 4 * H), jnp.float32),      # hoisted gate inputs
        pltpu.VMEM((L, b_pad, H), jnp.float32),               # h carry per layer
        pltpu.VMEM((L, b_pad, H), jnp.float32),               # c carry per layer
    ] + [pltpu.VMEM((t_blk * b_pad, H), jnp.float32) for _ in range(n_bufs)]

    kernel = functools.partial(
        _encoder_kernel, num_layers=L, t_blk=t_blk, t_last=t_last,
        num_chunks=num_chunks, b_pad=b_pad, hidden=H, unroll=unroll)

    grid_spec = pltpu.PrefetchScalarGridSpec(
        num_scalar_prefetch=0,
        grid=(num_chunks,),
        in_specs=in_specs,
        out_specs=out_specs,
        scratch_shapes=scratch_shapes,
    )

    states2d, h_n, c_n = pl.pallas_call(
        kernel,
        out_shape=out_shapes,
        grid_spec=grid_spec,
        compiler_params=pltpu.CompilerParams(
            dimension_semantics=("arbitrary",)),   # serial recurrence over time chunks
    )(x2d, *flat_w)

    states = states2d.reshape(t_pad, b_pad, H)[:T, :B]
    encoder_states = jnp.transpose(states, (1, 0, 2))          # (B, T, H)
    hidden = h_n[:, :B, :]                                     # (L, B, H)
    cell = c_n[:, :B, :]                                       # (L, B, H)
    return encoder_states, hidden, cell


# ------------------------- pure-JAX reference (for sanity) -------------------------
def _ref_lstm_layer(x_tm, w_ih, w_hh, bias):
    H = w_hh.shape[0]

    def step(carry, x_t):
        h, c = carry
        g = x_t @ w_ih + h @ w_hh + bias
        i_g = jax.nn.sigmoid(g[:, 0 * H:1 * H])
        f_g = jax.nn.sigmoid(g[:, 1 * H:2 * H])
        g_g = jnp.tanh(g[:, 2 * H:3 * H])
        o_g = jax.nn.sigmoid(g[:, 3 * H:4 * H])
        c_new = f_g * c + i_g * g_g
        h_new = o_g * jnp.tanh(c_new)
        return (h_new, c_new), h_new

    B = x_tm.shape[1]
    init = (jnp.zeros((B, H), x_tm.dtype), jnp.zeros((B, H), x_tm.dtype))
    (h_n, c_n), states = lax.scan(step, init, x_tm)
    return states, h_n, c_n


def _ref_encoder(x, params):
    x_tm = jnp.transpose(x, (1, 0, 2))
    hs, cs = [], []
    inp = x_tm
    for (w_ih, w_hh, bias) in params:
        inp, h_n, c_n = _ref_lstm_layer(inp, w_ih, w_hh, bias)
        hs.append(h_n)
        cs.append(c_n)
    return jnp.transpose(inp, (1, 0, 2)), jnp.stack(hs), jnp.stack(cs)
# -----------------------------------------------------------------------------------


def _check(x, params, **kw):
    enc_states, hidden, cell = encoder_forward(x, params, **kw)
    jax.block_until_ready((enc_states, hidden, cell))
    ref_states, ref_hidden, ref_cell = _ref_encoder(x, params)
    assert enc_states.shape == ref_states.shape
    assert hidden.shape == ref_hidden.shape
    assert cell.shape == ref_cell.shape
    assert jnp.allclose(enc_states, ref_states, atol=2e-5, rtol=2e-5)
    assert jnp.allclose(hidden, ref_hidden, atol=2e-5, rtol=2e-5)
    assert jnp.allclose(cell, ref_cell, atol=2e-5, rtol=2e-5)
    return enc_states, hidden, cell


if __name__ == "__main__":
    batch = 2
    seq = 8
    input_size = 16
    hidden_size = 32
    num_layers = 2
    dropout = 0.1  # train-time only; identity at inference

    key = jax.random.PRNGKey(0)
    key, xk, pk = jax.random.split(key, 3)
    x = jax.random.normal(xk, (batch, seq, input_size), jnp.float32)
    params = init_encoder_params(pk, input_size, hidden_size, num_layers)

    enc_states, hidden, cell = _check(x, params)
    assert enc_states.shape == (batch, seq, hidden_size)
    assert hidden.shape == (num_layers, batch, hidden_size)
    assert cell.shape == (num_layers, batch, hidden_size)

    # Check 2: multi-chunk grid with a shorter tail chunk (T=10, 4 timesteps/chunk)
    # exercises the cross-chunk h/c carry and the pl.when-gated tail trip count.
    key, xk2 = jax.random.split(key)
    x2 = jax.random.normal(xk2, (batch, 10, input_size), jnp.float32)
    _check(x2, params, chunk_timesteps=4)

    # Check 3: batch padding (B=3), 3 layers (ping-pong inter-layer buffers), tail chunk.
    key, xk3, pk3 = jax.random.split(key, 3)
    x3 = jax.random.normal(xk3, (3, 11, 8), jnp.float32)
    params3 = init_encoder_params(pk3, 8, hidden_size, 3)
    _check(x3, params3, chunk_timesteps=4)

    print("KERNEL_OK")
</pallas_src>

<mosaic_0001>
module attributes {stable_mosaic.version = 11 : i64} {
  func.func @_encoder_kernel(%arg0: i32, %arg1: memref<64x16xf32, #tpu.memory_space<vmem>>, %arg2: memref<16x128xf32, #tpu.memory_space<vmem>>, %arg3: memref<32x128xf32, #tpu.memory_space<vmem>>, %arg4: memref<1x128xf32, #tpu.memory_space<vmem>>, %arg5: memref<32x128xf32, #tpu.memory_space<vmem>>, %arg6: memref<32x128xf32, #tpu.memory_space<vmem>>, %arg7: memref<1x128xf32, #tpu.memory_space<vmem>>, %arg8: memref<64x32xf32, #tpu.memory_space<vmem>>, %arg9: memref<2x8x32xf32, #tpu.memory_space<vmem>>, %arg10: memref<2x8x32xf32, #tpu.memory_space<vmem>>, %arg11: memref<64x128xf32, #tpu.memory_space<vmem>>, %arg12: memref<2x8x32xf32, #tpu.memory_space<vmem>>, %arg13: memref<2x8x32xf32, #tpu.memory_space<vmem>>, %arg14: memref<64x32xf32, #tpu.memory_space<vmem>>) attributes {dimension_semantics = [#tpu.dimension_semantics<arbitrary>], iteration_bounds = array<i64: 1>, scalar_prefetch = 0 : i64, scratch_operands = 4 : i64, tpu.core_type = #tpu.core_type<tc>, window_params = [{transform_indices = @transform_0, window_bounds = array<i64: 64, 16>}, {pipeline_mode = #tpu.pipeline_mode<synchronous>, transform_indices = @transform_1, window_bounds = array<i64: 16, 128>}, {pipeline_mode = #tpu.pipeline_mode<synchronous>, transform_indices = @transform_2, window_bounds = array<i64: 32, 128>}, {pipeline_mode = #tpu.pipeline_mode<synchronous>, transform_indices = @transform_3, window_bounds = array<i64: 1, 128>}, {pipeline_mode = #tpu.pipeline_mode<synchronous>, transform_indices = @transform_4, window_bounds = array<i64: 32, 128>}, {pipeline_mode = #tpu.pipeline_mode<synchronous>, transform_indices = @transform_5, window_bounds = array<i64: 32, 128>}, {pipeline_mode = #tpu.pipeline_mode<synchronous>, transform_indices = @transform_6, window_bounds = array<i64: 1, 128>}, {transform_indices = @transform_7, window_bounds = array<i64: 64, 32>}, {pipeline_mode = #tpu.pipeline_mode<synchronous>, transform_indices = @transform_8, window_bounds = array<i64: 2, 8, 32>}, {pipeline_mode = #tpu.pipeline_mode<synchronous>, transform_indices = @transform_9, window_bounds = array<i64: 2, 8, 32>}]} {
    %c0_i32 = arith.constant 0 : i32
    %0 = arith.cmpi eq, %arg0, %c0_i32 : i32
    %1 = arith.extui %0 : i1 to i32
    %c0_i32_0 = arith.constant 0 : i32
    %2 = arith.cmpi ne, %1, %c0_i32_0 : i32
    scf.if %2 {
      %cst_136 = arith.constant 0.000000e+00 : f32
      %410 = vector.broadcast %cst_136 : f32 to vector<2x8x32xf32>
      %c0_137 = arith.constant 0 : index
      %c0_138 = arith.constant 0 : index
      %c0_139 = arith.constant 0 : index
      %411 = vector.load %arg12[%c0_137, %c0_138, %c0_139] : memref<2x8x32xf32, #tpu.memory_space<vmem>>, vector<2x8x32xf32>
      tpu.vector_store %arg12[%c0_137, %c0_138, %c0_139], %410 {strides = array<i32>} : memref<2x8x32xf32, #tpu.memory_space<vmem>>, vector<2x8x32xf32>,
      %cst_140 = arith.constant 0.000000e+00 : f32
      %412 = vector.broadcast %cst_140 : f32 to vector<2x8x32xf32>
      %c0_141 = arith.constant 0 : index
      %c0_142 = arith.constant 0 : index
      %c0_143 = arith.constant 0 : index
      %413 = vector.load %arg13[%c0_141, %c0_142, %c0_143] : memref<2x8x32xf32, #tpu.memory_space<vmem>>, vector<2x8x32xf32>
      tpu.vector_store %arg13[%c0_141, %c0_142, %c0_143], %412 {strides = array<i32>} : memref<2x8x32xf32, #tpu.memory_space<vmem>>, vector<2x8x32xf32>,
    } else {
    }
    %c0 = arith.constant 0 : index
    %c0_1 = arith.constant 0 : index
    %3 = vector.load %arg2[%c0, %c0_1] : memref<16x128xf32, #tpu.memory_space<vmem>>, vector<16x128xf32>
    %c0_2 = arith.constant 0 : index
    %c0_3 = arith.constant 0 : index
    %4 = vector.load %arg3[%c0_2, %c0_3] : memref<32x128xf32, #tpu.memory_space<vmem>>, vector<32x128xf32>
    %c0_4 = arith.constant 0 : index
    %c0_5 = arith.constant 0 : index
    %5 = vector.load %arg4[%c0_4, %c0_5] : memref<1x128xf32, #tpu.memory_space<vmem>>, vector<1x128xf32>
    %c0_6 = arith.constant 0 : index
    %c0_7 = arith.constant 0 : index
    %6 = vector.load %arg1[%c0_6, %c0_7] : memref<64x16xf32, #tpu.memory_space<vmem>>, vector<64x16xf32>
    %cst = arith.constant dense<0.000000e+00> : vector<64x128xf32>
    %7 = tpu.matmul %6, %3, %cst {dimension_numbers = #tpu.dot_dimension_numbers<[1], [0], [0], [1], [0, 0, 1, 1], [], []>} : vector<64x16xf32>, vector<16x128xf32>, vector<64x128xf32> -> vector<64x128xf32>
    %8 = vector.broadcast %5 : vector<1x128xf32> to vector<64x128xf32>
    %9 = arith.addf %7, %8 : vector<64x128xf32>
    %c0_8 = arith.constant 0 : index
    %c0_9 = arith.constant 0 : index
    %10 = vector.load %arg11[%c0_8, %c0_9] : memref<64x128xf32, #tpu.memory_space<vmem>>, vector<64x128xf32>
    tpu.vector_store %arg11[%c0_8, %c0_9], %9 {strides = array<i32>} : memref<64x128xf32, #tpu.memory_space<vmem>>, vector<64x128xf32>,
    %c0_10 = arith.constant 0 : index
    %c0_11 = arith.constant 0 : index
    %c0_12 = arith.constant 0 : index
    %11 = vector.load %arg12[%c0_10, %c0_11, %c0_12] : memref<2x8x32xf32, #tpu.memory_space<vmem>>, vector<1x8x32xf32>
    %12 = vector.shape_cast %11 : vector<1x8x32xf32> to vector<8x32xf32>
    %c0_13 = arith.constant 0 : index
    %c0_14 = arith.constant 0 : index
    %c0_15 = arith.constant 0 : index
    %13 = vector.load %arg13[%c0_13, %c0_14, %c0_15] : memref<2x8x32xf32, #tpu.memory_space<vmem>>, vector<1x8x32xf32>
    %14 = vector.shape_cast %13 : vector<1x8x32xf32> to vector<8x32xf32>
    %c0_i32_16 = arith.constant 0 : i32
    %c8_i32 = arith.constant 8 : i32
    %15 = arith.muli %c0_i32_16, %c8_i32 : i32
    %16 = tpu.assume_multiple %15, 8 : i32
    %17 = arith.index_cast %16 : i32 to index
    %c0_17 = arith.constant 0 : index
    %18 = vector.load %arg11[%17, %c0_17] : memref<64x128xf32, #tpu.memory_space<vmem>>, vector<8x128xf32>
    %cst_18 = arith.constant dense<0.000000e+00> : vector<8x128xf32>
    %19 = tpu.matmul %12, %4, %cst_18 {dimension_numbers = #tpu.dot_dimension_numbers<[1], [0], [0], [1], [0, 0, 1, 1], [], []>} : vector<8x32xf32>, vector<32x128xf32>, vector<8x128xf32> -> vector<8x128xf32>
    %20 = arith.addf %18, %19 : vector<8x128xf32>
    %21 = arith.negf %20 : vector<8x128xf32>
    %22 = math.exp %21 : vector<8x128xf32>
    %cst_19 = arith.constant 1.000000e+00 : f32
    %23 = vector.broadcast %cst_19 : f32 to vector<8x128xf32>
    %24 = arith.addf %23, %22 : vector<8x128xf32>
    %25 = arith.divf %23, %24 : vector<8x128xf32>
    %26 = math.tanh %20 : vector<8x128xf32>
    %27 = vector.extract_strided_slice %25 {offsets = [0, 0], sizes = [8, 32], strides = [1, 1]} : vector<8x128xf32> to vector<8x32xf32>
    %28 = vector.extract_strided_slice %25 {offsets = [0, 32], sizes = [8, 32], strides = [1, 1]} : vector<8x128xf32> to vector<8x32xf32>
    %29 = vector.extract_strided_slice %26 {offsets = [0, 64], sizes = [8, 32], strides = [1, 1]} : vector<8x128xf32> to vector<8x32xf32>
    %30 = vector.extract_strided_slice %25 {offsets = [0, 96], sizes = [8, 32], strides = [1, 1]} : vector<8x128xf32> to vector<8x32xf32>
    %31 = arith.mulf %28, %14 : vector<8x32xf32>
    %32 = arith.mulf %27, %29 : vector<8x32xf32>
    %33 = arith.addf %31, %32 : vector<8x32xf32>
    %34 = math.tanh %33 : vector<8x32xf32>
    %35 = arith.mulf %30, %34 : vector<8x32xf32>
    %36 = arith.index_cast %16 : i32 to index
    %c0_20 = arith.constant 0 : index
    %37 = vector.load %arg14[%36, %c0_20] : memref<64x32xf32, #tpu.memory_space<vmem>>, vector<8x32xf32>
    tpu.vector_store %arg14[%36, %c0_20], %35 {strides = array<i32>} : memref<64x32xf32, #tpu.memory_space<vmem>>, vector<8x32xf32>,
    %c1_i32 = arith.constant 1 : i32
    %c8_i32_21 = arith.constant 8 : i32
    %38 = arith.muli %c1_i32, %c8_i32_21 : i32
    %39 = tpu.assume_multiple %38, 8 : i32
    %40 = arith.index_cast %39 : i32 to index
    %c0_22 = arith.constant 0 : index
    %41 = vector.load %arg11[%40, %c0_22] : memref<64x128xf32, #tpu.memory_space<vmem>>, vector<8x128xf32>
    %cst_23 = arith.constant dense<0.000000e+00> : vector<8x128xf32>
    %42 = tpu.matmul %35, %4, %cst_23 {dimension_numbers = #tpu.dot_dimension_numbers<[1], [0], [0], [1], [0, 0, 1, 1], [], []>} : vector<8x32xf32>, vector<32x128xf32>, vector<8x128xf32> -> vector<8x128xf32>
    %43 = arith.addf %41, %42 : vector<8x128xf32>
    %44 = arith.negf %43 : vector<8x128xf32>
    %45 = math.exp %44 : vector<8x128xf32>
    %cst_24 = arith.constant 1.000000e+00 : f32
    %46 = vector.broadcast %cst_24 : f32 to vector<8x128xf32>
    %47 = arith.addf %46, %45 : vector<8x128xf32>
    %48 = arith.divf %46, %47 : vector<8x128xf32>
    %49 = math.tanh %43 : vector<8x128xf32>
    %50 = vector.extract_strided_slice %48 {offsets = [0, 0], sizes = [8, 32], strides = [1, 1]} : vector<8x128xf32> to vector<8x32xf32>
    %51 = vector.extract_strided_slice %48 {offsets = [0, 32], sizes = [8, 32], strides = [1, 1]} : vector<8x128xf32> to vector<8x32xf32>
    %52 = vector.extract_strided_slice %49 {offsets = [0, 64], sizes = [8, 32], strides = [1, 1]} : vector<8x128xf32> to vector<8x32xf32>
    %53 = vector.extract_strided_slice %48 {offsets = [0, 96], sizes = [8, 32], strides = [1, 1]} : vector<8x128xf32> to vector<8x32xf32>
    %54 = arith.mulf %51, %33 : vector<8x32xf32>
    %55 = arith.mulf %50, %52 : vector<8x32xf32>
    %56 = arith.addf %54, %55 : vector<8x32xf32>
    %57 = math.tanh %56 : vector<8x32xf32>
    %58 = arith.mulf %53, %57 : vector<8x32xf32>
    %59 = arith.index_cast %39 : i32 to index
    %c0_25 = arith.constant 0 : index
    %60 = vector.load %arg14[%59, %c0_25] : memref<64x32xf32, #tpu.memory_space<vmem>>, vector<8x32xf32>
    tpu.vector_store %arg14[%59, %c0_25], %58 {strides = array<i32>} : memref<64x32xf32, #tpu.memory_space<vmem>>, vector<8x32xf32>,
    %c2_i32 = arith.constant 2 : i32
    %c8_i32_26 = arith.constant 8 : i32
    %61 = arith.muli %c2_i32, %c8_i32_26 : i32
    %62 = tpu.assume_multiple %61, 8 : i32
    %63 = arith.index_cast %62 : i32 to index
    %c0_27 = arith.constant 0 : index
    %64 = vector.load %arg11[%63, %c0_27] : memref<64x128xf32, #tpu.memory_space<vmem>>, vector<8x128xf32>
    %cst_28 = arith.constant dense<0.000000e+00> : vector<8x128xf32>
    %65 = tpu.matmul %58, %4, %cst_28 {dimension_numbers = #tpu.dot_dimension_numbers<[1], [0], [0], [1], [0, 0, 1, 1], [], []>} : vector<8x32xf32>, vector<32x128xf32>, vector<8x128xf32> -> vector<8x128xf32>
    %66 = arith.addf %64, %65 : vector<8x128xf32>
    %67 = arith.negf %66 : vector<8x128xf32>
    %68 = math.exp %67 : vector<8x128xf32>
    %cst_29 = arith.constant 1.000000e+00 : f32
    %69 = vector.broadcast %cst_29 : f32 to vector<8x128xf32>
    %70 = arith.addf %69, %68 : vector<8x128xf32>
    %71 = arith.divf %69, %70 : vector<8x128xf32>
    %72 = math.tanh %66 : vector<8x128xf32>
    %73 = vector.extract_strided_slice %71 {offsets = [0, 0], sizes = [8, 32], strides = [1, 1]} : vector<8x128xf32> to vector<8x32xf32>
    %74 = vector.extract_strided_slice %71 {offsets = [0, 32], sizes = [8, 32], strides = [1, 1]} : vector<8x128xf32> to vector<8x32xf32>
    %75 = vector.extract_strided_slice %72 {offsets = [0, 64], sizes = [8, 32], strides = [1, 1]} : vector<8x128xf32> to vector<8x32xf32>
    %76 = vector.extract_strided_slice %71 {offsets = [0, 96], sizes = [8, 32], strides = [1, 1]} : vector<8x128xf32> to vector<8x32xf32>
    %77 = arith.mulf %74, %56 : vector<8x32xf32>
    %78 = arith.mulf %73, %75 : vector<8x32xf32>
    %79 = arith.addf %77, %78 : vector<8x32xf32>
    %80 = math.tanh %79 : vector<8x32xf32>
    %81 = arith.mulf %76, %80 : vector<8x32xf32>
    %82 = arith.index_cast %62 : i32 to index
    %c0_30 = arith.constant 0 : index
    %83 = vector.load %arg14[%82, %c0_30] : memref<64x32xf32, #tpu.memory_space<vmem>>, vector<8x32xf32>
    tpu.vector_store %arg14[%82, %c0_30], %81 {strides = array<i32>} : memref<64x32xf32, #tpu.memory_space<vmem>>, vector<8x32xf32>,
    %c3_i32 = arith.constant 3 : i32
    %c8_i32_31 = arith.constant 8 : i32
    %84 = arith.muli %c3_i32, %c8_i32_31 : i32
    %85 = tpu.assume_multiple %84, 8 : i32
    %86 = arith.index_cast %85 : i32 to index
    %c0_32 = arith.constant 0 : index
    %87 = vector.load %arg11[%86, %c0_32] : memref<64x128xf32, #tpu.memory_space<vmem>>, vector<8x128xf32>
    %cst_33 = arith.constant dense<0.000000e+00> : vector<8x128xf32>
    %88 = tpu.matmul %81, %4, %cst_33 {dimension_numbers = #tpu.dot_dimension_numbers<[1], [0], [0], [1], [0, 0, 1, 1], [], []>} : vector<8x32xf32>, vector<32x128xf32>, vector<8x128xf32> -> vector<8x128xf32>
    %89 = arith.addf %87, %88 : vector<8x128xf32>
    %90 = arith.negf %89 : vector<8x128xf32>
    %91 = math.exp %90 : vector<8x128xf32>
    %cst_34 = arith.constant 1.000000e+00 : f32
    %92 = vector.broadcast %cst_34 : f32 to vector<8x128xf32>
    %93 = arith.addf %92, %91 : vector<8x128xf32>
    %94 = arith.divf %92, %93 : vector<8x128xf32>
    %95 = math.tanh %89 : vector<8x128xf32>
    %96 = vector.extract_strided_slice %94 {offsets = [0, 0], sizes = [8, 32], strides = [1, 1]} : vector<8x128xf32> to vector<8x32xf32>
    %97 = vector.extract_strided_slice %94 {offsets = [0, 32], sizes = [8, 32], strides = [1, 1]} : vector<8x128xf32> to vector<8x32xf32>
    %98 = vector.extract_strided_slice %95 {offsets = [0, 64], sizes = [8, 32], strides = [1, 1]} : vector<8x128xf32> to vector<8x32xf32>
    %99 = vector.extract_strided_slice %94 {offsets = [0, 96], sizes = [8, 32], strides = [1, 1]} : vector<8x128xf32> to vector<8x32xf32>
    %100 = arith.mulf %97, %79 : vector<8x32xf32>
    %101 = arith.mulf %96, %98 : vector<8x32xf32>
    %102 = arith.addf %100, %101 : vector<8x32xf32>
    %103 = math.tanh %102 : vector<8x32xf32>
    %104 = arith.mulf %99, %103 : vector<8x32xf32>
    %105 = arith.index_cast %85 : i32 to index
    %c0_35 = arith.constant 0 : index
    %106 = vector.load %arg14[%105, %c0_35] : memref<64x32xf32, #tpu.memory_space<vmem>>, vector<8x32xf32>
    tpu.vector_store %arg14[%105, %c0_35], %104 {strides = array<i32>} : memref<64x32xf32, #tpu.memory_space<vmem>>, vector<8x32xf32>,
    %c4_i32 = arith.constant 4 : i32
    %c8_i32_36 = arith.constant 8 : i32
    %107 = arith.muli %c4_i32, %c8_i32_36 : i32
    %108 = tpu.assume_multiple %107, 8 : i32
    %109 = arith.index_cast %108 : i32 to index
    %c0_37 = arith.constant 0 : index
    %110 = vector.load %arg11[%109, %c0_37] : memref<64x128xf32, #tpu.memory_space<vmem>>, vector<8x128xf32>
    %cst_38 = arith.constant dense<0.000000e+00> : vector<8x128xf32>
    %111 = tpu.matmul %104, %4, %cst_38 {dimension_numbers = #tpu.dot_dimension_numbers<[1], [0], [0], [1], [0, 0, 1, 1], [], []>} : vector<8x32xf32>, vector<32x128xf32>, vector<8x128xf32> -> vector<8x128xf32>
    %112 = arith.addf %110, %111 : vector<8x128xf32>
    %113 = arith.negf %112 : vector<8x128xf32>
    %114 = math.exp %113 : vector<8x128xf32>
    %cst_39 = arith.constant 1.000000e+00 : f32
    %115 = vector.broadcast %cst_39 : f32 to vector<8x128xf32>
    %116 = arith.addf %115, %114 : vector<8x128xf32>
    %117 = arith.divf %115, %116 : vector<8x128xf32>
    %118 = math.tanh %112 : vector<8x128xf32>
    %119 = vector.extract_strided_slice %117 {offsets = [0, 0], sizes = [8, 32], strides = [1, 1]} : vector<8x128xf32> to vector<8x32xf32>
    %120 = vector.extract_strided_slice %117 {offsets = [0, 32], sizes = [8, 32], strides = [1, 1]} : vector<8x128xf32> to vector<8x32xf32>
    %121 = vector.extract_strided_slice %118 {offsets = [0, 64], sizes = [8, 32], strides = [1, 1]} : vector<8x128xf32> to vector<8x32xf32>
    %122 = vector.extract_strided_slice %117 {offsets = [0, 96], sizes = [8, 32], strides = [1, 1]} : vector<8x128xf32> to vector<8x32xf32>
    %123 = arith.mulf %120, %102 : vector<8x32xf32>
    %124 = arith.mulf %119, %121 : vector<8x32xf32>
    %125 = arith.addf %123, %124 : vector<8x32xf32>
    %126 = math.tanh %125 : vector<8x32xf32>
    %127 = arith.mulf %122, %126 : vector<8x32xf32>
    %128 = arith.index_cast %108 : i32 to index
    %c0_40 = arith.constant 0 : index
    %129 = vector.load %arg14[%128, %c0_40] : memref<64x32xf32, #tpu.memory_space<vmem>>, vector<8x32xf32>
    tpu.vector_store %arg14[%128, %c0_40], %127 {strides = array<i32>} : memref<64x32xf32, #tpu.memory_space<vmem>>, vector<8x32xf32>,
    %c5_i32 = arith.constant 5 : i32
    %c8_i32_41 = arith.constant 8 : i32
    %130 = arith.muli %c5_i32, %c8_i32_41 : i32
    %131 = tpu.assume_multiple %130, 8 : i32
    %132 = arith.index_cast %131 : i32 to index
    %c0_42 = arith.constant 0 : index
    %133 = vector.load %arg11[%132, %c0_42] : memref<64x128xf32, #tpu.memory_space<vmem>>, vector<8x128xf32>
    %cst_43 = arith.constant dense<0.000000e+00> : vector<8x128xf32>
    %134 = tpu.matmul %127, %4, %cst_43 {dimension_numbers = #tpu.dot_dimension_numbers<[1], [0], [0], [1], [0, 0, 1, 1], [], []>} : vector<8x32xf32>, vector<32x128xf32>, vector<8x128xf32> -> vector<8x128xf32>
    %135 = arith.addf %133, %134 : vector<8x128xf32>
    %136 = arith.negf %135 : vector<8x128xf32>
    %137 = math.exp %136 : vector<8x128xf32>
    %cst_44 = arith.constant 1.000000e+00 : f32
    %138 = vector.broadcast %cst_44 : f32 to vector<8x128xf32>
    %139 = arith.addf %138, %137 : vector<8x128xf32>
    %140 = arith.divf %138, %139 : vector<8x128xf32>
    %141 = math.tanh %135 : vector<8x128xf32>
    %142 = vector.extract_strided_slice %140 {offsets = [0, 0], sizes = [8, 32], strides = [1, 1]} : vector<8x128xf32> to vector<8x32xf32>
    %143 = vector.extract_strided_slice %140 {offsets = [0, 32], sizes = [8, 32], strides = [1, 1]} : vector<8x128xf32> to vector<8x32xf32>
    %144 = vector.extract_strided_slice %141 {offsets = [0, 64], sizes = [8, 32], strides = [1, 1]} : vector<8x128xf32> to vector<8x32xf32>
    %145 = vector.extract_strided_slice %140 {offsets = [0, 96], sizes = [8, 32], strides = [1, 1]} : vector<8x128xf32> to vector<8x32xf32>
    %146 = arith.mulf %143, %125 : vector<8x32xf32>
    %147 = arith.mulf %142, %144 : vector<8x32xf32>
    %148 = arith.addf %146, %147 : vector<8x32xf32>
    %149 = math.tanh %148 : vector<8x32xf32>
    %150 = arith.mulf %145, %149 : vector<8x32xf32>
    %151 = arith.index_cast %131 : i32 to index
    %c0_45 = arith.constant 0 : index
    %152 = vector.load %arg14[%151, %c0_45] : memref<64x32xf32, #tpu.memory_space<vmem>>, vector<8x32xf32>
    tpu.vector_store %arg14[%151, %c0_45], %150 {strides = array<i32>} : memref<64x32xf32, #tpu.memory_space<vmem>>, vector<8x32xf32>,
    %c6_i32 = arith.constant 6 : i32
    %c8_i32_46 = arith.constant 8 : i32
    %153 = arith.muli %c6_i32, %c8_i32_46 : i32
    %154 = tpu.assume_multiple %153, 8 : i32
    %155 = arith.index_cast %154 : i32 to index
    %c0_47 = arith.constant 0 : index
    %156 = vector.load %arg11[%155, %c0_47] : memref<64x128xf32, #tpu.memory_space<vmem>>, vector<8x128xf32>
    %cst_48 = arith.constant dense<0.000000e+00> : vector<8x128xf32>
    %157 = tpu.matmul %150, %4, %cst_48 {dimension_numbers = #tpu.dot_dimension_numbers<[1], [0], [0], [1], [0, 0, 1, 1], [], []>} : vector<8x32xf32>, vector<32x128xf32>, vector<8x128xf32> -> vector<8x128xf32>
    %158 = arith.addf %156, %157 : vector<8x128xf32>
    %159 = arith.negf %158 : vector<8x128xf32>
    %160 = math.exp %159 : vector<8x128xf32>
    %cst_49 = arith.constant 1.000000e+00 : f32
    %161 = vector.broadcast %cst_49 : f32 to vector<8x128xf32>
    %162 = arith.addf %161, %160 : vector<8x128xf32>
    %163 = arith.divf %161, %162 : vector<8x128xf32>
    %164 = math.tanh %158 : vector<8x128xf32>
    %165 = vector.extract_strided_slice %163 {offsets = [0, 0], sizes = [8, 32], strides = [1, 1]} : vector<8x128xf32> to vector<8x32xf32>
    %166 = vector.extract_strided_slice %163 {offsets = [0, 32], sizes = [8, 32], strides = [1, 1]} : vector<8x128xf32> to vector<8x32xf32>
    %167 = vector.extract_strided_slice %164 {offsets = [0, 64], sizes = [8, 32], strides = [1, 1]} : vector<8x128xf32> to vector<8x32xf32>
    %168 = vector.extract_strided_slice %163 {offsets = [0, 96], sizes = [8, 32], strides = [1, 1]} : vector<8x128xf32> to vector<8x32xf32>
    %169 = arith.mulf %166, %148 : vector<8x32xf32>
    %170 = arith.mulf %165, %167 : vector<8x32xf32>
    %171 = arith.addf %169, %170 : vector<8x32xf32>
    %172 = math.tanh %171 : vector<8x32xf32>
    %173 = arith.mulf %168, %172 : vector<8x32xf32>
    %174 = arith.index_cast %154 : i32 to index
    %c0_50 = arith.constant 0 : index
    %175 = vector.load %arg14[%174, %c0_50] : memref<64x32xf32, #tpu.memory_space<vmem>>, vector<8x32xf32>
    tpu.vector_store %arg14[%174, %c0_50], %173 {strides = array<i32>} : memref<64x32xf32, #tpu.memory_space<vmem>>, vector<8x32xf32>,
    %c7_i32 = arith.constant 7 : i32
    %c8_i32_51 = arith.constant 8 : i32
    %176 = arith.muli %c7_i32, %c8_i32_51 : i32
    %177 = tpu.assume_multiple %176, 8 : i32
    %178 = arith.index_cast %177 : i32 to index
    %c0_52 = arith.constant 0 : index
    %179 = vector.load %arg11[%178, %c0_52] : memref<64x128xf32, #tpu.memory_space<vmem>>, vector<8x128xf32>
    %cst_53 = arith.constant dense<0.000000e+00> : vector<8x128xf32>
    %180 = tpu.matmul %173, %4, %cst_53 {dimension_numbers = #tpu.dot_dimension_numbers<[1], [0], [0], [1], [0, 0, 1, 1], [], []>} : vector<8x32xf32>, vector<32x128xf32>, vector<8x128xf32> -> vector<8x128xf32>
    %181 = arith.addf %179, %180 : vector<8x128xf32>
    %182 = arith.negf %181 : vector<8x128xf32>
    %183 = math.exp %182 : vector<8x128xf32>
    %cst_54 = arith.constant 1.000000e+00 : f32
    %184 = vector.broadcast %cst_54 : f32 to vector<8x128xf32>
    %185 = arith.addf %184, %183 : vector<8x128xf32>
    %186 = arith.divf %184, %185 : vector<8x128xf32>
    %187 = math.tanh %181 : vector<8x128xf32>
    %188 = vector.extract_strided_slice %186 {offsets = [0, 0], sizes = [8, 32], strides = [1, 1]} : vector<8x128xf32> to vector<8x32xf32>
    %189 = vector.extract_strided_slice %186 {offsets = [0, 32], sizes = [8, 32], strides = [1, 1]} : vector<8x128xf32> to vector<8x32xf32>
    %190 = vector.extract_strided_slice %187 {offsets = [0, 64], sizes = [8, 32], strides = [1, 1]} : vector<8x128xf32> to vector<8x32xf32>
    %191 = vector.extract_strided_slice %186 {offsets = [0, 96], sizes = [8, 32], strides = [1, 1]} : vector<8x128xf32> to vector<8x32xf32>
    %192 = arith.mulf %189, %171 : vector<8x32xf32>
    %193 = arith.mulf %188, %190 : vector<8x32xf32>
    %194 = arith.addf %192, %193 : vector<8x32xf32>
    %195 = math.tanh %194 : vector<8x32xf32>
    %196 = arith.mulf %191, %195 : vector<8x32xf32>
    %197 = arith.index_cast %177 : i32 to index
    %c0_55 = arith.constant 0 : index
    %198 = vector.load %arg14[%197, %c0_55] : memref<64x32xf32, #tpu.memory_space<vmem>>, vector<8x32xf32>
    tpu.vector_store %arg14[%197, %c0_55], %196 {strides = array<i32>} : memref<64x32xf32, #tpu.memory_space<vmem>>, vector<8x32xf32>,
    %c8_i32_56 = arith.constant 8 : i32
    %c0_57 = arith.constant 0 : index
    %c0_58 = arith.constant 0 : index
    %c0_59 = arith.constant 0 : index
    %199 = vector.load %arg12[%c0_57, %c0_58, %c0_59] : memref<2x8x32xf32, #tpu.memory_space<vmem>>, vector<1x8x32xf32>
    %200 = vector.shape_cast %199 : vector<1x8x32xf32> to vector<8x32xf32>
    %201 = vector.shape_cast %196 : vector<8x32xf32> to vector<1x8x32xf32>
    tpu.vector_store %arg12[%c0_57, %c0_58, %c0_59], %201 {strides = array<i32>} : memref<2x8x32xf32, #tpu.memory_space<vmem>>, vector<1x8x32xf32>,
    %c0_60 = arith.constant 0 : index
    %c0_61 = arith.constant 0 : index
    %c0_62 = arith.constant 0 : index
    %202 = vector.load %arg13[%c0_60, %c0_61, %c0_62] : memref<2x8x32xf32, #tpu.memory_space<vmem>>, vector<1x8x32xf32>
    %203 = vector.shape_cast %202 : vector<1x8x32xf32> to vector<8x32xf32>
    %204 = vector.shape_cast %194 : vector<8x32xf32> to vector<1x8x32xf32>
    tpu.vector_store %arg13[%c0_60, %c0_61, %c0_62], %204 {strides = array<i32>} : memref<2x8x32xf32, #tpu.memory_space<vmem>>, vector<1x8x32xf32>,
    %c0_63 = arith.constant 0 : index
    %c0_64 = arith.constant 0 : index
    %205 = vector.load %arg5[%c0_63, %c0_64] : memref<32x128xf32, #tpu.memory_space<vmem>>, vector<32x128xf32>
    %c0_65 = arith.constant 0 : index
    %c0_66 = arith.constant 0 : index
    %206 = vector.load %arg6[%c0_65, %c0_66] : memref<32x128xf32, #tpu.memory_space<vmem>>, vector<32x128xf32>
    %c0_67 = arith.constant 0 : index
    %c0_68 = arith.constant 0 : index
    %207 = vector.load %arg7[%c0_67, %c0_68] : memref<1x128xf32, #tpu.memory_space<vmem>>, vector<1x128xf32>
    %c0_69 = arith.constant 0 : index
    %c0_70 = arith.constant 0 : index
    %208 = vector.load %arg14[%c0_69, %c0_70] : memref<64x32xf32, #tpu.memory_space<vmem>>, vector<64x32xf32>
    %cst_71 = arith.constant dense<0.000000e+00> : vector<64x128xf32>
    %209 = tpu.matmul %208, %205, %cst_71 {dimension_numbers = #tpu.dot_dimension_numbers<[1], [0], [0], [1], [0, 0, 1, 1], [], []>} : vector<64x32xf32>, vector<32x128xf32>, vector<64x128xf32> -> vector<64x128xf32>
    %210 = vector.broadcast %207 : vector<1x128xf32> to vector<64x128xf32>
    %211 = arith.addf %209, %210 : vector<64x128xf32>
    %c0_72 = arith.constant 0 : index
    %c0_73 = arith.constant 0 : index
    %212 = vector.load %arg11[%c0_72, %c0_73] : memref<64x128xf32, #tpu.memory_space<vmem>>, vector<64x128xf32>
    tpu.vector_store %arg11[%c0_72, %c0_73], %211 {strides = array<i32>} : memref<64x128xf32, #tpu.memory_space<vmem>>, vector<64x128xf32>,
    %c1 = arith.constant 1 : index
    %c0_74 = arith.constant 0 : index
    %c0_75 = arith.constant 0 : index
    %213 = vector.load %arg12[%c1, %c0_74, %c0_75] : memref<2x8x32xf32, #tpu.memory_space<vmem>>, vector<1x8x32xf32>
    %214 = vector.shape_cast %213 : vector<1x8x32xf32> to vector<8x32xf32>
    %c1_76 = arith.constant 1 : index
    %c0_77 = arith.constant 0 : index
    %c0_78 = arith.constant 0 : index
    %215 = vector.load %arg13[%c1_76, %c0_77, %c0_78] : memref<2x8x32xf32, #tpu.memory_space<vmem>>, vector<1x8x32xf32>
    %216 = vector.shape_cast %215 : vector<1x8x32xf32> to vector<8x32xf32>
    %c0_i32_79 = arith.constant 0 : i32
    %c8_i32_80 = arith.constant 8 : i32
    %217 = arith.muli %c0_i32_79, %c8_i32_80 : i32
    %218 = tpu.assume_multiple %217, 8 : i32
    %219 = arith.index_cast %218 : i32 to index
    %c0_81 = arith.constant 0 : index
    %220 = vector.load %arg11[%219, %c0_81] : memref<64x128xf32, #tpu.memory_space<vmem>>, vector<8x128xf32>
    %cst_82 = arith.constant dense<0.000000e+00> : vector<8x128xf32>
    %221 = tpu.matmul %214, %206, %cst_82 {dimension_numbers = #tpu.dot_dimension_numbers<[1], [0], [0], [1], [0, 0, 1, 1], [], []>} : vector<8x32xf32>, vector<32x128xf32>, vector<8x128xf32> -> vector<8x128xf32>
    %222 = arith.addf %220, %221 : vector<8x128xf32>
    %223 = arith.negf %222 : vector<8x128xf32>
    %224 = math.exp %223 : vector<8x128xf32>
    %cst_83 = arith.constant 1.000000e+00 : f32
    %225 = vector.broadcast %cst_83 : f32 to vector<8x128xf32>
    %226 = arith.addf %225, %224 : vector<8x128xf32>
    %227 = arith.divf %225, %226 : vector<8x128xf32>
    %228 = math.tanh %222 : vector<8x128xf32>
    %229 = vector.extract_strided_slice %227 {offsets = [0, 0], sizes = [8, 32], strides = [1, 1]} : vector<8x128xf32> to vector<8x32xf32>
    %230 = vector.extract_strided_slice %227 {offsets = [0, 32], sizes = [8, 32], strides = [1, 1]} : vector<8x128xf32> to vector<8x32xf32>
    %231 = vector.extract_strided_slice %228 {offsets = [0, 64], sizes = [8, 32], strides = [1, 1]} : vector<8x128xf32> to vector<8x32xf32>
    %232 = vector.extract_strided_slice %227 {offsets = [0, 96], sizes = [8, 32], strides = [1, 1]} : vector<8x128xf32> to vector<8x32xf32>
    %233 = arith.mulf %230, %216 : vector<8x32xf32>
    %234 = arith.mulf %229, %231 : vector<8x32xf32>
    %235 = arith.addf %233, %234 : vector<8x32xf32>
    %236 = math.tanh %235 : vector<8x32xf32>
    %237 = arith.mulf %232, %236 : vector<8x32xf32>
    %238 = arith.index_cast %218 : i32 to index
    %c0_84 = arith.constant 0 : index
    %239 = vector.load %arg8[%238, %c0_84] : memref<64x32xf32, #tpu.memory_space<vmem>>, vector<8x32xf32>
    tpu.vector_store %arg8[%238, %c0_84], %237 {strides = array<i32>} : memref<64x32xf32, #tpu.memory_space<vmem>>, vector<8x32xf32>,
    %c1_i32_85 = arith.constant 1 : i32
    %c8_i32_86 = arith.constant 8 : i32
    %240 = arith.muli %c1_i32_85, %c8_i32_86 : i32
    %241 = tpu.assume_multiple %240, 8 : i32
    %242 = arith.index_cast %241 : i32 to index
    %c0_87 = arith.constant 0 : index
    %243 = vector.load %arg11[%242, %c0_87] : memref<64x128xf32, #tpu.memory_space<vmem>>, vector<8x128xf32>
    %cst_88 = arith.constant dense<0.000000e+00> : vector<8x128xf32>
    %244 = tpu.matmul %237, %206, %cst_88 {dimension_numbers = #tpu.dot_dimension_numbers<[1], [0], [0], [1], [0, 0, 1, 1], [], []>} : vector<8x32xf32>, vector<32x128xf32>, vector<8x128xf32> -> vector<8x128xf32>
    %245 = arith.addf %243, %244 : vector<8x128xf32>
    %246 = arith.negf %245 : vector<8x128xf32>
    %247 = math.exp %246 : vector<8x128xf32>
    %cst_89 = arith.constant 1.000000e+00 : f32
    %248 = vector.broadcast %cst_89 : f32 to vector<8x128xf32>
    %249 = arith.addf %248, %247 : vector<8x128xf32>
    %250 = arith.divf %248, %249 : vector<8x128xf32>
    %251 = math.tanh %245 : vector<8x128xf32>
    %252 = vector.extract_strided_slice %250 {offsets = [0, 0], sizes = [8, 32], strides = [1, 1]} : vector<8x128xf32> to vector<8x32xf32>
    %253 = vector.extract_strided_slice %250 {offsets = [0, 32], sizes = [8, 32], strides = [1, 1]} : vector<8x128xf32> to vector<8x32xf32>
    %254 = vector.extract_strided_slice %251 {offsets = [0, 64], sizes = [8, 32], strides = [1, 1]} : vector<8x128xf32> to vector<8x32xf32>
    %255 = vector.extract_strided_slice %250 {offsets = [0, 96], sizes = [8, 32], strides = [1, 1]} : vector<8x128xf32> to vector<8x32xf32>
    %256 = arith.mulf %253, %235 : vector<8x32xf32>
    %257 = arith.mulf %252, %254 : vector<8x32xf32>
    %258 = arith.addf %256, %257 : vector<8x32xf32>
    %259 = math.tanh %258 : vector<8x32xf32>
    %260 = arith.mulf %255, %259 : vector<8x32xf32>
    %261 = arith.index_cast %241 : i32 to index
    %c0_90 = arith.constant 0 : index
    %262 = vector.load %arg8[%261, %c0_90] : memref<64x32xf32, #tpu.memory_space<vmem>>, vector<8x32xf32>
    tpu.vector_store %arg8[%261, %c0_90], %260 {strides = array<i32>} : memref<64x32xf32, #tpu.memory_space<vmem>>, vector<8x32xf32>,
    %c2_i32_91 = arith.constant 2 : i32
    %c8_i32_92 = arith.constant 8 : i32
    %263 = arith.muli %c2_i32_91, %c8_i32_92 : i32
    %264 = tpu.assume_multiple %263, 8 : i32
    %265 = arith.index_cast %264 : i32 to index
    %c0_93 = arith.constant 0 : index
    %266 = vector.load %arg11[%265, %c0_93] : memref<64x128xf32, #tpu.memory_space<vmem>>, vector<8x128xf32>
    %cst_94 = arith.constant dense<0.000000e+00> : vector<8x128xf32>
    %267 = tpu.matmul %260, %206, %cst_94 {dimension_numbers = #tpu.dot_dimension_numbers<[1], [0], [0], [1], [0, 0, 1, 1], [], []>} : vector<8x32xf32>, vector<32x128xf32>, vector<8x128xf32> -> vector<8x128xf32>
    %268 = arith.addf %266, %267 : vector<8x128xf32>
    %269 = arith.negf %268 : vector<8x128xf32>
    %270 = math.exp %269 : vector<8x128xf32>
    %cst_95 = arith.constant 1.000000e+00 : f32
    %271 = vector.broadcast %cst_95 : f32 to vector<8x128xf32>
    %272 = arith.addf %271, %270 : vector<8x128xf32>
    %273 = arith.divf %271, %272 : vector<8x128xf32>
    %274 = math.tanh %268 : vector<8x128xf32>
    %275 = vector.extract_strided_slice %273 {offsets = [0, 0], sizes = [8, 32], strides = [1, 1]} : vector<8x128xf32> to vector<8x32xf32>
    %276 = vector.extract_strided_slice %273 {offsets = [0, 32], sizes = [8, 32], strides = [1, 1]} : vector<8x128xf32> to vector<8x32xf32>
    %277 = vector.extract_strided_slice %274 {offsets = [0, 64], sizes = [8, 32], strides = [1, 1]} : vector<8x128xf32> to vector<8x32xf32>
    %278 = vector.extract_strided_slice %273 {offsets = [0, 96], sizes = [8, 32], strides = [1, 1]} : vector<8x128xf32> to vector<8x32xf32>
    %279 = arith.mulf %276, %258 : vector<8x32xf32>
    %280 = arith.mulf %275, %277 : vector<8x32xf32>
    %281 = arith.addf %279, %280 : vector<8x32xf32>
    %282 = math.tanh %281 : vector<8x32xf32>
    %283 = arith.mulf %278, %282 : vector<8x32xf32>
    %284 = arith.index_cast %264 : i32 to index
    %c0_96 = arith.constant 0 : index
    %285 = vector.load %arg8[%284, %c0_96] : memref<64x32xf32, #tpu.memory_space<vmem>>, vector<8x32xf32>
    tpu.vector_store %arg8[%284, %c0_96], %283 {strides = array<i32>} : memref<64x32xf32, #tpu.memory_space<vmem>>, vector<8x32xf32>,
    %c3_i32_97 = arith.constant 3 : i32
    %c8_i32_98 = arith.constant 8 : i32
    %286 = arith.muli %c3_i32_97, %c8_i32_98 : i32
    %287 = tpu.assume_multiple %286, 8 : i32
    %288 = arith.index_cast %287 : i32 to index
    %c0_99 = arith.constant 0 : index
    %289 = vector.load %arg11[%288, %c0_99] : memref<64x128xf32, #tpu.memory_space<vmem>>, vector<8x128xf32>
    %cst_100 = arith.constant dense<0.000000e+00> : vector<8x128xf32>
    %290 = tpu.matmul %283, %206, %cst_100 {dimension_numbers = #tpu.dot_dimension_numbers<[1], [0], [0], [1], [0, 0, 1, 1], [], []>} : vector<8x32xf32>, vector<32x128xf32>, vector<8x128xf32> -> vector<8x128xf32>
    %291 = arith.addf %289, %290 : vector<8x128xf32>
    %292 = arith.negf %291 : vector<8x128xf32>
    %293 = math.exp %292 : vector<8x128xf32>
    %cst_101 = arith.constant 1.000000e+00 : f32
    %294 = vector.broadcast %cst_101 : f32 to vector<8x128xf32>
    %295 = arith.addf %294, %293 : vector<8x128xf32>
    %296 = arith.divf %294, %295 : vector<8x128xf32>
    %297 = math.tanh %291 : vector<8x128xf32>
    %298 = vector.extract_strided_slice %296 {offsets = [0, 0], sizes = [8, 32], strides = [1, 1]} : vector<8x128xf32> to vector<8x32xf32>
    %299 = vector.extract_strided_slice %296 {offsets = [0, 32], sizes = [8, 32], strides = [1, 1]} : vector<8x128xf32> to vector<8x32xf32>
    %300 = vector.extract_strided_slice %297 {offsets = [0, 64], sizes = [8, 32], strides = [1, 1]} : vector<8x128xf32> to vector<8x32xf32>
    %301 = vector.extract_strided_slice %296 {offsets = [0, 96], sizes = [8, 32], strides = [1, 1]} : vector<8x128xf32> to vector<8x32xf32>
    %302 = arith.mulf %299, %281 : vector<8x32xf32>
    %303 = arith.mulf %298, %300 : vector<8x32xf32>
    %304 = arith.addf %302, %303 : vector<8x32xf32>
    %305 = math.tanh %304 : vector<8x32xf32>
    %306 = arith.mulf %301, %305 : vector<8x32xf32>
    %307 = arith.index_cast %287 : i32 to index
    %c0_102 = arith.constant 0 : index
    %308 = vector.load %arg8[%307, %c0_102] : memref<64x32xf32, #tpu.memory_space<vmem>>, vector<8x32xf32>
    tpu.vector_store %arg8[%307, %c0_102], %306 {strides = array<i32>} : memref<64x32xf32, #tpu.memory_space<vmem>>, vector<8x32xf32>,
    %c4_i32_103 = arith.constant 4 : i32
    %c8_i32_104 = arith.constant 8 : i32
    %309 = arith.muli %c4_i32_103, %c8_i32_104 : i32
    %310 = tpu.assume_multiple %309, 8 : i32
    %311 = arith.index_cast %310 : i32 to index
    %c0_105 = arith.constant 0 : index
    %312 = vector.load %arg11[%311, %c0_105] : memref<64x128xf32, #tpu.memory_space<vmem>>, vector<8x128xf32>
    %cst_106 = arith.constant dense<0.000000e+00> : vector<8x128xf32>
    %313 = tpu.matmul %306, %206, %cst_106 {dimension_numbers = #tpu.dot_dimension_numbers<[1], [0], [0], [1], [0, 0, 1, 1], [], []>} : vector<8x32xf32>, vector<32x128xf32>, vector<8x128xf32> -> vector<8x128xf32>
    %314 = arith.addf %312, %313 : vector<8x128xf32>
    %315 = arith.negf %314 : vector<8x128xf32>
    %316 = math.exp %315 : vector<8x128xf32>
    %cst_107 = arith.constant 1.000000e+00 : f32
    %317 = vector.broadcast %cst_107 : f32 to vector<8x128xf32>
    %318 = arith.addf %317, %316 : vector<8x128xf32>
    %319 = arith.divf %317, %318 : vector<8x128xf32>
    %320 = math.tanh %314 : vector<8x128xf32>
    %321 = vector.extract_strided_slice %319 {offsets = [0, 0], sizes = [8, 32], strides = [1, 1]} : vector<8x128xf32> to vector<8x32xf32>
    %322 = vector.extract_strided_slice %319 {offsets = [0, 32], sizes = [8, 32], strides = [1, 1]} : vector<8x128xf32> to vector<8x32xf32>
    %323 = vector.extract_strided_slice %320 {offsets = [0, 64], sizes = [8, 32], strides = [1, 1]} : vector<8x128xf32> to vector<8x32xf32>
    %324 = vector.extract_strided_slice %319 {offsets = [0, 96], sizes = [8, 32], strides = [1, 1]} : vector<8x128xf32> to vector<8x32xf32>
    %325 = arith.mulf %322, %304 : vector<8x32xf32>
    %326 = arith.mulf %321, %323 : vector<8x32xf32>
    %327 = arith.addf %325, %326 : vector<8x32xf32>
    %328 = math.tanh %327 : vector<8x32xf32>
    %329 = arith.mulf %324, %328 : vector<8x32xf32>
    %330 = arith.index_cast %310 : i32 to index
    %c0_108 = arith.constant 0 : index
    %331 = vector.load %arg8[%330, %c0_108] : memref<64x32xf32, #tpu.memory_space<vmem>>, vector<8x32xf32>
    tpu.vector_store %arg8[%330, %c0_108], %329 {strides = array<i32>} : memref<64x32xf32, #tpu.memory_space<vmem>>, vector<8x32xf32>,
    %c5_i32_109 = arith.constant 5 : i32
    %c8_i32_110 = arith.constant 8 : i32
    %332 = arith.muli %c5_i32_109, %c8_i32_110 : i32
    %333 = tpu.assume_multiple %332, 8 : i32
    %334 = arith.index_cast %333 : i32 to index
    %c0_111 = arith.constant 0 : index
    %335 = vector.load %arg11[%334, %c0_111] : memref<64x128xf32, #tpu.memory_space<vmem>>, vector<8x128xf32>
    %cst_112 = arith.constant dense<0.000000e+00> : vector<8x128xf32>
    %336 = tpu.matmul %329, %206, %cst_112 {dimension_numbers = #tpu.dot_dimension_numbers<[1], [0], [0], [1], [0, 0, 1, 1], [], []>} : vector<8x32xf32>, vector<32x128xf32>, vector<8x128xf32> -> vector<8x128xf32>
    %337 = arith.addf %335, %336 : vector<8x128xf32>
    %338 = arith.negf %337 : vector<8x128xf32>
    %339 = math.exp %338 : vector<8x128xf32>
    %cst_113 = arith.constant 1.000000e+00 : f32
    %340 = vector.broadcast %cst_113 : f32 to vector<8x128xf32>
    %341 = arith.addf %340, %339 : vector<8x128xf32>
    %342 = arith.divf %340, %341 : vector<8x128xf32>
    %343 = math.tanh %337 : vector<8x128xf32>
    %344 = vector.extract_strided_slice %342 {offsets = [0, 0], sizes = [8, 32], strides = [1, 1]} : vector<8x128xf32> to vector<8x32xf32>
    %345 = vector.extract_strided_slice %342 {offsets = [0, 32], sizes = [8, 32], strides = [1, 1]} : vector<8x128xf32> to vector<8x32xf32>
    %346 = vector.extract_strided_slice %343 {offsets = [0, 64], sizes = [8, 32], strides = [1, 1]} : vector<8x128xf32> to vector<8x32xf32>
    %347 = vector.extract_strided_slice %342 {offsets = [0, 96], sizes = [8, 32], strides = [1, 1]} : vector<8x128xf32> to vector<8x32xf32>
    %348 = arith.mulf %345, %327 : vector<8x32xf32>
    %349 = arith.mulf %344, %346 : vector<8x32xf32>
    %350 = arith.addf %348, %349 : vector<8x32xf32>
    %351 = math.tanh %350 : vector<8x32xf32>
    %352 = arith.mulf %347, %351 : vector<8x32xf32>
    %353 = arith.index_cast %333 : i32 to index
    %c0_114 = arith.constant 0 : index
    %354 = vector.load %arg8[%353, %c0_114] : memref<64x32xf32, #tpu.memory_space<vmem>>, vector<8x32xf32>
    tpu.vector_store %arg8[%353, %c0_114], %352 {strides = array<i32>} : memref<64x32xf32, #tpu.memory_space<vmem>>, vector<8x32xf32>,
    %c6_i32_115 = arith.constant 6 : i32
    %c8_i32_116 = arith.constant 8 : i32
    %355 = arith.muli %c6_i32_115, %c8_i32_116 : i32
    %356 = tpu.assume_multiple %355, 8 : i32
    %357 = arith.index_cast %356 : i32 to index
    %c0_117 = arith.constant 0 : index
    %358 = vector.load %arg11[%357, %c0_117] : memref<64x128xf32, #tpu.memory_space<vmem>>, vector<8x128xf32>
    %cst_118 = arith.constant dense<0.000000e+00> : vector<8x128xf32>
    %359 = tpu.matmul %352, %206, %cst_118 {dimension_numbers = #tpu.dot_dimension_numbers<[1], [0], [0], [1], [0, 0, 1, 1], [], []>} : vector<8x32xf32>, vector<32x128xf32>, vector<8x128xf32> -> vector<8x128xf32>
    %360 = arith.addf %358, %359 : vector<8x128xf32>
    %361 = arith.negf %360 : vector<8x128xf32>
    %362 = math.exp %361 : vector<8x128xf32>
    %cst_119 = arith.constant 1.000000e+00 : f32
    %363 = vector.broadcast %cst_119 : f32 to vector<8x128xf32>
    %364 = arith.addf %363, %362 : vector<8x128xf32>
    %365 = arith.divf %363, %364 : vector<8x128xf32>
    %366 = math.tanh %360 : vector<8x128xf32>
    %367 = vector.extract_strided_slice %365 {offsets = [0, 0], sizes = [8, 32], strides = [1, 1]} : vector<8x128xf32> to vector<8x32xf32>
    %368 = vector.extract_strided_slice %365 {offsets = [0, 32], sizes = [8, 32], strides = [1, 1]} : vector<8x128xf32> to vector<8x32xf32>
    %369 = vector.extract_strided_slice %366 {offsets = [0, 64], sizes = [8, 32], strides = [1, 1]} : vector<8x128xf32> to vector<8x32xf32>
    %370 = vector.extract_strided_slice %365 {offsets = [0, 96], sizes = [8, 32], strides = [1, 1]} : vector<8x128xf32> to vector<8x32xf32>
    %371 = arith.mulf %368, %350 : vector<8x32xf32>
    %372 = arith.mulf %367, %369 : vector<8x32xf32>
    %373 = arith.addf %371, %372 : vector<8x32xf32>
    %374 = math.tanh %373 : vector<8x32xf32>
    %375 = arith.mulf %370, %374 : vector<8x32xf32>
    %376 = arith.index_cast %356 : i32 to index
    %c0_120 = arith.constant 0 : index
    %377 = vector.load %arg8[%376, %c0_120] : memref<64x32xf32, #tpu.memory_space<vmem>>, vector<8x32xf32>
    tpu.vector_store %arg8[%376, %c0_120], %375 {strides = array<i32>} : memref<64x32xf32, #tpu.memory_space<vmem>>, vector<8x32xf32>,
    %c7_i32_121 = arith.constant 7 : i32
    %c8_i32_122 = arith.constant 8 : i32
    %378 = arith.muli %c7_i32_121, %c8_i32_122 : i32
    %379 = tpu.assume_multiple %378, 8 : i32
    %380 = arith.index_cast %379 : i32 to index
    %c0_123 = arith.constant 0 : index
    %381 = vector.load %arg11[%380, %c0_123] : memref<64x128xf32, #tpu.memory_space<vmem>>, vector<8x128xf32>
    %cst_124 = arith.constant dense<0.000000e+00> : vector<8x128xf32>
    %382 = tpu.matmul %375, %206, %cst_124 {dimension_numbers = #tpu.dot_dimension_numbers<[1], [0], [0], [1], [0, 0, 1, 1], [], []>} : vector<8x32xf32>, vector<32x128xf32>, vector<8x128xf32> -> vector<8x128xf32>
    %383 = arith.addf %381, %382 : vector<8x128xf32>
    %384 = arith.negf %383 : vector<8x128xf32>
    %385 = math.exp %384 : vector<8x128xf32>
    %cst_125 = arith.constant 1.000000e+00 : f32
    %386 = vector.broadcast %cst_125 : f32 to vector<8x128xf32>
    %387 = arith.addf %386, %385 : vector<8x128xf32>
    %388 = arith.divf %386, %387 : vector<8x128xf32>
    %389 = math.tanh %383 : vector<8x128xf32>
    %390 = vector.extract_strided_slice %388 {offsets = [0, 0], sizes = [8, 32], strides = [1, 1]} : vector<8x128xf32> to vector<8x32xf32>
    %391 = vector.extract_strided_slice %388 {offsets = [0, 32], sizes = [8, 32], strides = [1, 1]} : vector<8x128xf32> to vector<8x32xf32>
    %392 = vector.extract_strided_slice %389 {offsets = [0, 64], sizes = [8, 32], strides = [1, 1]} : vector<8x128xf32> to vector<8x32xf32>
    %393 = vector.extract_strided_slice %388 {offsets = [0, 96], sizes = [8, 32], strides = [1, 1]} : vector<8x128xf32> to vector<8x32xf32>
    %394 = arith.mulf %391, %373 : vector<8x32xf32>
    %395 = arith.mulf %390, %392 : vector<8x32xf32>
    %396 = arith.addf %394, %395 : vector<8x32xf32>
    %397 = math.tanh %396 : vector<8x32xf32>
    %398 = arith.mulf %393, %397 : vector<8x32xf32>
    %399 = arith.index_cast %379 : i32 to index
    %c0_126 = arith.constant 0 : index
    %400 = vector.load %arg8[%399, %c0_126] : memref<64x32xf32, #tpu.memory_space<vmem>>, vector<8x32xf32>
    tpu.vector_store %arg8[%399, %c0_126], %398 {strides = array<i32>} : memref<64x32xf32, #tpu.memory_space<vmem>>, vector<8x32xf32>,
    %c8_i32_127 = arith.constant 8 : i32
    %c1_128 = arith.constant 1 : index
    %c0_129 = arith.constant 0 : index
    %c0_130 = arith.constant 0 : index
    %401 = vector.load %arg12[%c1_128, %c0_129, %c0_130] : memref<2x8x32xf32, #tpu.memory_space<vmem>>, vector<1x8x32xf32>
    %402 = vector.shape_cast %401 : vector<1x8x32xf32> to vector<8x32xf32>
    %403 = vector.shape_cast %398 : vector<8x32xf32> to vector<1x8x32xf32>
    tpu.vector_store %arg12[%c1_128, %c0_129, %c0_130], %403 {strides = array<i32>} : memref<2x8x32xf32, #tpu.memory_space<vmem>>, vector<1x8x32xf32>,
    %c1_131 = arith.constant 1 : index
    %c0_132 = arith.constant 0 : index
    %c0_133 = arith.constant 0 : index
    %404 = vector.load %arg13[%c1_131, %c0_132, %c0_133] : memref<2x8x32xf32, #tpu.memory_space<vmem>>, vector<1x8x32xf32>
    %405 = vector.shape_cast %404 : vector<1x8x32xf32> to vector<8x32xf32>
    %406 = vector.shape_cast %396 : vector<8x32xf32> to vector<1x8x32xf32>
    tpu.vector_store %arg13[%c1_131, %c0_132, %c0_133], %406 {strides = array<i32>} : memref<2x8x32xf32, #tpu.memory_space<vmem>>, vector<1x8x32xf32>,
    %c0_i32_134 = arith.constant 0 : i32
    %407 = arith.cmpi eq, %arg0, %c0_i32_134 : i32
    %408 = arith.extui %407 : i1 to i32
    %c0_i32_135 = arith.constant 0 : i32
    %409 = arith.cmpi ne, %408, %c0_i32_135 : i32
    scf.if %409 {
      %c0_136 = arith.constant 0 : index
      %c0_137 = arith.constant 0 : index
      %c0_138 = arith.constant 0 : index
      %410 = vector.load %arg12[%c0_136, %c0_137, %c0_138] : memref<2x8x32xf32, #tpu.memory_space<vmem>>, vector<2x8x32xf32>
      %c0_139 = arith.constant 0 : index
      %c0_140 = arith.constant 0 : index
      %c0_141 = arith.constant 0 : index
      %411 = vector.load %arg9[%c0_139, %c0_140, %c0_141] : memref<2x8x32xf32, #tpu.memory_space<vmem>>, vector<2x8x32xf32>
      tpu.vector_store %arg9[%c0_139, %c0_140, %c0_141], %410 {strides = array<i32>} : memref<2x8x32xf32, #tpu.memory_space<vmem>>, vector<2x8x32xf32>,
      %c0_142 = arith.constant 0 : index
      %c0_143 = arith.constant 0 : index
      %c0_144 = arith.constant 0 : index
      %412 = vector.load %arg13[%c0_142, %c0_143, %c0_144] : memref<2x8x32xf32, #tpu.memory_space<vmem>>, vector<2x8x32xf32>
      %c0_145 = arith.constant 0 : index
      %c0_146 = arith.constant 0 : index
      %c0_147 = arith.constant 0 : index
      %413 = vector.load %arg10[%c0_145, %c0_146, %c0_147] : memref<2x8x32xf32, #tpu.memory_space<vmem>>, vector<2x8x32xf32>
      tpu.vector_store %arg10[%c0_145, %c0_146, %c0_147], %412 {strides = array<i32>} : memref<2x8x32xf32, #tpu.memory_space<vmem>>, vector<2x8x32xf32>,
    } else {
    }
    return
  }
  func.func @transform_0(%arg0: i32) -> (i32, i32) {
    %c0_i32 = arith.constant 0 : i32
    %c0_i32_0 = arith.constant 0 : i32
    return %arg0, %c0_i32 : i32, i32
  }
  func.func @transform_1(%arg0: i32) -> (i32, i32) {
    %c0_i32 = arith.constant 0 : i32
    %c0_i32_0 = arith.constant 0 : i32
    %c0_i32_1 = arith.constant 0 : i32
    return %c0_i32, %c0_i32_0 : i32, i32
  }
  func.func @transform_2(%arg0: i32) -> (i32, i32) {
    %c0_i32 = arith.constant 0 : i32
    %c0_i32_0 = arith.constant 0 : i32
    %c0_i32_1 = arith.constant 0 : i32
    return %c0_i32, %c0_i32_0 : i32, i32
  }
  func.func @transform_3(%arg0: i32) -> (i32, i32) {
    %c0_i32 = arith.constant 0 : i32
    %c0_i32_0 = arith.constant 0 : i32
    %c0_i32_1 = arith.constant 0 : i32
    return %c0_i32, %c0_i32_0 : i32, i32
  }
  func.func @transform_4(%arg0: i32) -> (i32, i32) {
    %c0_i32 = arith.constant 0 : i32
    %c0_i32_0 = arith.constant 0 : i32
    %c0_i32_1 = arith.constant 0 : i32
    return %c0_i32, %c0_i32_0 : i32, i32
  }
  func.func @transform_5(%arg0: i32) -> (i32, i32) {
    %c0_i32 = arith.constant 0 : i32
    %c0_i32_0 = arith.constant 0 : i32
    %c0_i32_1 = arith.constant 0 : i32
    return %c0_i32, %c0_i32_0 : i32, i32
  }
  func.func @transform_6(%arg0: i32) -> (i32, i32) {
    %c0_i32 = arith.constant 0 : i32
    %c0_i32_0 = arith.constant 0 : i32
    %c0_i32_1 = arith.constant 0 : i32
    return %c0_i32, %c0_i32_0 : i32, i32
  }
  func.func @transform_7(%arg0: i32) -> (i32, i32) {
    %c0_i32 = arith.constant 0 : i32
    %c0_i32_0 = arith.constant 0 : i32
    return %arg0, %c0_i32 : i32, i32
  }
  func.func @transform_8(%arg0: i32) -> (i32, i32, i32) {
    %c0_i32 = arith.constant 0 : i32
    %c0_i32_0 = arith.constant 0 : i32
    %c0_i32_1 = arith.constant 0 : i32
    %c0_i32_2 = arith.constant 0 : i32
    return %c0_i32, %c0_i32_0, %c0_i32_1 : i32, i32, i32
  }
  func.func @transform_9(%arg0: i32) -> (i32, i32, i32) {
    %c0_i32 = arith.constant 0 : i32
    %c0_i32_0 = arith.constant 0 : i32
    %c0_i32_1 = arith.constant 0 : i32
    %c0_i32_2 = arith.constant 0 : i32
    return %c0_i32, %c0_i32_0, %c0_i32_1 : i32, i32, i32
  }
}

</mosaic_0001>

<llo_original>
// kernel: tpu_custom_call.1
$region0: #{tpu_custom_call.1}
  #allocation0 [shape = 'u32[]', space=smem, size = 0x4, offset = 0x4, fixed_abs, tag = 'smem constant byte address 0x4 - core index']
  #allocation1 [shape = 'u32[72,128]{1,0:T(1,128)}', space=vmem, size = 0x9000, scoped, tag = 'internal scratch']
  #allocation2 [shape = 'f32[64,128]{1,0:T(8,128)}', space=vmem, size = 0x8000, scoped, tag = 'scratch operand']
  #allocation3 [shape = 'f32[2,8,32]{2,1,0:T(8,128)}', space=vmem, size = 0x2000, scoped, tag = 'scratch operand']
  #allocation4 [shape = 'f32[2,8,32]{2,1,0:T(8,128)}', space=vmem, size = 0x2000, scoped, tag = 'scratch operand']
  #allocation5 [shape = 'f32[64,32]{1,0:T(8,128)}', space=vmem, size = 0x8000, scoped, tag = 'scratch operand']
  %s0 = inlined_call_operand.vmem [shape: f32[64,16], index: 0, kind: input, shape index: {}]
  %s1 = inlined_call_operand.vmem [shape: f32[16,128], index: 1, kind: input, shape index: {}]
  %s2 = inlined_call_operand.vmem [shape: f32[32,128], index: 2, kind: input, shape index: {}]
  %s3 = inlined_call_operand.vmem [shape: f32[1,128], index: 3, kind: input, shape index: {}]
  %s4 = inlined_call_operand.vmem [shape: f32[32,128], index: 4, kind: input, shape index: {}]
  %s5 = inlined_call_operand.hbm [shape: f32[32,128], index: 5, kind: input, shape index: {}]
  %s6 = inlined_call_operand.vmem [shape: f32[1,128], index: 6, kind: input, shape index: {}]
  %s7 = inlined_call_operand.vmem [shape: f32[64,32], index: 7, kind: output, shape index: {0}]
  %s8 = inlined_call_operand.hbm [shape: f32[2,8,32], index: 8, kind: output, shape index: {1}]
  %s9 = inlined_call_operand.hbm [shape: f32[2,8,32], index: 9, kind: output, shape index: {2}]
  %10 = xla_tuple %s7, %s8, %s9
  %s11 = sld [smem:[#allocation0]]
  $region66: #{tpu_custom_call.1} parent=0
    _
  %s13 = ssub.s32 1, %s11
  %s14 = scalar_select 0, %s13, %s11
  $region1: #{tpu_custom_call.1} parent=0
    #allocation6 [shape = 'u8[16384]{0}', space=vmem, size = 0x4000, scoped, tag = 'input window, operand 5, single buffered']
    #allocation7 [shape = 's32[1]{0}', space=sflag, size = 0x4, scoped, tag = 'scoped memory for tpu_custom_call.1']
    #allocation8 [shape = 's32[1]{0}', space=sflag, size = 0x4, scoped, tag = 'scoped memory for tpu_custom_call.1']
    #allocation9 [shape = 'u8[8192]{0}', space=vmem, size = 0x2000, scoped, tag = 'output window, operand 1, single buffered']
    #allocation10 [shape = 'u8[8192]{0}', space=vmem, size = 0x2000, scoped, tag = 'output window, operand 2, single buffered']
    #allocation11 [shape = 's32[1]{0}', space=sflag, size = 0x4, scoped, tag = 'scoped memory for tpu_custom_call.1']
    %15 = vsyncpa [#allocation7], 0
    %16 = vsyncpa [#allocation8], 0
    %17 = vsyncpa [#allocation11], 0
    // Predicated region
    $region2: #{tpu_custom_call.1} parent=1 // pred_check
      _
    $region3: #{tpu_custom_call.1} parent=1 // pred_check_branch
      %19 = sbr.rel (0) target = $region5
    $region4: #{tpu_custom_call.1} parent=1 // pred_region
      _
    $region5: #{tpu_custom_call.1} parent=1 // pred_fallthru
      _
    // Predicated region
    $region6: #{tpu_custom_call.1} parent=1 // pred_check
      _
    $region7: #{tpu_custom_call.1} parent=1 // pred_check_branch
      %21 = sbr.rel (0) target = $region9
    $region8: #{tpu_custom_call.1} parent=1 // pred_region
      _
    $region9: #{tpu_custom_call.1} parent=1 // pred_fallthru
      _
    // Predicated region
    $region10: #{tpu_custom_call.1} parent=1 // pred_check
      _
    $region11: #{tpu_custom_call.1} parent=1 // pred_check_branch
      %23 = sbr.rel (0) target = $region13
    $region12: #{tpu_custom_call.1} parent=1 // pred_region
      _
    $region13: #{tpu_custom_call.1} parent=1 // pred_fallthru
      _
    // Predicated region
    $region14: #{tpu_custom_call.1} parent=1 // pred_check
      _
    $region15: #{tpu_custom_call.1} parent=1 // pred_check_branch
      %25 = sbr.rel (0) target = $region17
    $region16: #{tpu_custom_call.1} parent=1 // pred_region
      _
    $region17: #{tpu_custom_call.1} parent=1 // pred_fallthru
      _
    // Predicated region
    $region18: #{tpu_custom_call.1} parent=1 // pred_check
      _
    $region19: #{tpu_custom_call.1} parent=1 // pred_check_branch
      %27 = sbr.rel (0) target = $region21
    $region20: #{tpu_custom_call.1} parent=1 // pred_region
      _
    $region21: #{tpu_custom_call.1} parent=1 // pred_fallthru
      _
    // Predicated region
    $region22: #{tpu_custom_call.1} parent=1 // pred_check
      _
    $region23: #{tpu_custom_call.1} parent=1 // pred_check_branch
      %29 = sbr.rel (0) target = $region25
    $region24: #{tpu_custom_call.1} parent=1 // pred_region
      %31 = vsyncadd [#allocation7], 0
      %s32 = sshll.u32 %s5, 4
      %s33 = int_to_ptr.hbm [resolvable:$true] %s32
      %s34 = sshll.u32 [#allocation6], 4
      %s35 = int_to_ptr.vmem [resolvable:$true] %s34
      %40 = dma.hbm_to_vmem [thread:$0]  %s33, 512, %s35, [#allocation7], 128, 128, 8
    $region25: #{tpu_custom_call.1} parent=1 // pred_fallthru
      _
    // Predicated region
    $region26: #{tpu_custom_call.1} parent=1 // pred_check
      _
    $region27: #{tpu_custom_call.1} parent=1 // pred_check_branch
      %42 = sbr.rel (0) target = $region29
    $region28: #{tpu_custom_call.1} parent=1 // pred_region
      _
    $region29: #{tpu_custom_call.1} parent=1 // pred_fallthru
      _
    // Predicated region
    $region30: #{tpu_custom_call.1} parent=1 // pred_check
      _
    $region31: #{tpu_custom_call.1} parent=1 // pred_check_branch
      %44 = sbr.rel (0) target = $region33
    $region32: #{tpu_custom_call.1} parent=1 // pred_region
      %46 = dma.done [#allocation7], 512
    $region33: #{tpu_custom_call.1} parent=1 // pred_fallthru
      _
    %p47 = scmp.eq.s32.totalorder 0, 0
    // Predicated region
    $region34: #{tpu_custom_call.1} parent=1 // pred_check
      %p48 = pneg %p47
    $region35: #{tpu_custom_call.1} parent=1 // pred_check_branch
      %50 = sbr.rel (%p48) target = $region37
    $region36: #{tpu_custom_call.1} parent=1 // pred_region
      %vm51 = vcmask 261120
      %52 = vst.msk [vmem:[#allocation3] sm:$0xff] %vm51, 0.0
      %53 = vst.msk [vmem:[#allocation3 + $0x8] sm:$0xff] %vm51, 0.0
      %54 = vst.msk [vmem:[#allocation4] sm:$0xff] %vm51, 0.0
      %55 = vst.msk [vmem:[#allocation4 + $0x8] sm:$0xff] %vm51, 0.0
    $region37: #{tpu_custom_call.1} parent=1 // pred_fallthru
      _
    %v56 = vld [vmem:[%s1] sm:$0xff]
    %v57 = vld [vmem:[%s1 + $0x8] sm:$0xff]
    %v58 = vld [vmem:[%s2] sm:$0xff]
    %v59 = vld [vmem:[%s2 + $0x8] sm:$0xff]
    %v60 = vld [vmem:[%s2 + $0x10] sm:$0xff]
    %v61 = vld [vmem:[%s2 + $0x18] sm:$0xff]
    %v62 = vld [vmem:[%s3] sm:$0x1]
    %v63 = vld [vmem:[%s0] sm:$0xff]
    %v64 = vld [vmem:[%s0 + $0x8] sm:$0xff]
    %v65 = vld [vmem:[%s0 + $0x10] sm:$0xff]
    %v66 = vld [vmem:[%s0 + $0x18] sm:$0xff]
    %v67 = vld [vmem:[%s0 + $0x20] sm:$0xff]
    %v68 = vld [vmem:[%s0 + $0x28] sm:$0xff]
    %v69 = vld [vmem:[%s0 + $0x30] sm:$0xff]
    %v70 = vld [vmem:[%s0 + $0x38] sm:$0xff]
    %v72 = vperm.slane %v62, 0
    %vm74 = vcmask 130048
    %v76 = vsel %vm74, %v63, 0
    %v79 = vsel %vm74, %v64, 0
    %v82 = vsel %vm74, %v65, 0
    %v85 = vsel %vm74, %v66, 0
    %v88 = vsel %vm74, %v67, 0
    %v91 = vsel %vm74, %v68, 0
    %v94 = vsel %vm74, %v69, 0
    %v97 = vsel %vm74, %v70, 0
    %99 = vmatpush.msra.mxu0 0.0
    %100 = vmatpush.msra.mxu0 0.0
    %101 = vmatpush.msra.mxu0 0.0
    %102 = vmatpush.msra.mxu0 0.0
    %103 = vmatpush.msra.mxu0 0.0
    %104 = vmatpush.msra.mxu0 0.0
    %105 = vmatpush.msra.mxu0 0.0
    %106 = vmatpush.msra.mxu0 0.0
    %107 = vmatpush.msra.mxu0 0.0
    %108 = vmatpush.msra.mxu0 0.0
    %109 = vmatpush.msra.mxu0 0.0
    %110 = vmatpush.msra.mxu0 0.0
    %111 = vmatpush.msra.mxu0 0.0
    %112 = vmatpush.msra.mxu0 0.0
    %113 = vmatpush.msra.mxu0 %v57
    %114 = vmatpush.msra.mxu0 %v56
    %115 = vmatmul.f32.gmra.mxu0 %v76
    %v116 = vpop.f32.mrf.mxu0
    %v117 = vadd.f32 %v72, %v116
    %118 = vmatmul.f32.gmra.mxu0 %v79
    %v119 = vpop.f32.mrf.mxu0
    %v120 = vadd.f32 %v72, %v119
    %121 = vmatmul.f32.gmra.mxu0 %v82
    %v122 = vpop.f32.mrf.mxu0
    %v123 = vadd.f32 %v72, %v122
    %124 = vmatmul.f32.gmra.mxu0 %v85
    %v125 = vpop.f32.mrf.mxu0
    %v126 = vadd.f32 %v72, %v125
    %127 = vmatmul.f32.gmra.mxu0 %v88
    %v128 = vpop.f32.mrf.mxu0
    %v129 = vadd.f32 %v72, %v128
    %130 = vmatmul.f32.gmra.mxu0 %v91
    %v131 = vpop.f32.mrf.mxu0
    %v132 = vadd.f32 %v72, %v131
    %133 = vmatmul.f32.gmra.mxu0 %v94
    %v134 = vpop.f32.mrf.mxu0
    %v135 = vadd.f32 %v72, %v134
    %136 = vmatmul.f32.gmra.mxu0 %v97
    %v137 = vpop.f32.mrf.mxu0
    %v138 = vadd.f32 %v72, %v137
    %139 = vdwg.mxu0
    %140 = vst [vmem:[#allocation2] sm:$0xff] %v117
    %141 = vst [vmem:[#allocation2 + $0x8] sm:$0xff] %v120
    %142 = vst [vmem:[#allocation2 + $0x10] sm:$0xff] %v123
    %143 = vst [vmem:[#allocation2 + $0x18] sm:$0xff] %v126
    %144 = vst [vmem:[#allocation2 + $0x20] sm:$0xff] %v129
    %145 = vst [vmem:[#allocation2 + $0x28] sm:$0xff] %v132
    %146 = vst [vmem:[#allocation2 + $0x30] sm:$0xff] %v135
    %147 = vst [vmem:[#allocation2 + $0x38] sm:$0xff] %v138
    %v148 = vld [vmem:[#allocation3] sm:$0xff]
    %v149 = vld [vmem:[#allocation4] sm:$0xff]
    %v150 = vld [vmem:[#allocation2] sm:$0xff]
    %vm151 = vcmask 261120
    %v153 = vsel %vm151, %v148, 0
    %155 = vmatpush.msra.mxu0 0.0
    %156 = vmatpush.msra.mxu0 0.0
    %157 = vmatpush.msra.mxu0 0.0
    %158 = vmatpush.msra.mxu0 0.0
    %159 = vmatpush.msra.mxu0 0.0
    %160 = vmatpush.msra.mxu0 0.0
    %161 = vmatpush.msra.mxu0 0.0
    %162 = vmatpush.msra.mxu0 0.0
    %163 = vmatpush.msra.mxu0 0.0
    %164 = vmatpush.msra.mxu0 0.0
    %165 = vmatpush.msra.mxu0 0.0
    %166 = vmatpush.msra.mxu0 0.0
    %167 = vmatpush.msra.mxu0 %v61
    %168 = vmatpush.msra.mxu0 %v60
    %169 = vmatpush.msra.mxu0 %v59
    %170 = vmatpush.msra.mxu0 %v58
    %171 = vmatmul.f32.gmra.mxu0 %v153
    %v172 = vpop.f32.mrf.mxu0
    %v173 = vadd.f32 0.0, %v172
    %174 = vdwg.mxu0
    %v175 = vadd.f32 %v150, %v173
    %v176 = vxor.u32 %v175, 2147483648
    %v177 = vmul.f32 %v176, 1.442695
    %v178 = vpow.pop %v177
    %v179 = vadd.f32 %v178, 1.0
    %v180 = vrcp.pop %v179
    %v181 = vmul.f32 %v179, %v180
    %v182 = vsub.f32 1.0, %v181
    %v183 = vmul.f32 %v180, %v182
    %v184 = vadd.f32 %v180, %v183
    %vm185 = vweird.f32 %v179
    %vm186 = vweird.f32 %v180
    %vm187 = vmor %vm185, %vm186
    %v188 = vsel %vm187, %v180, %v184
    %v189 = vand.u32 2147483647, %v179
    %vm190 = vcmp.eq.f32.partialorder %v189, 8.507059e+37
    %v191 = vand.u32 %v179, 2147483648
    %v192 = vor.u32 1.1754944e-38, %v191
    %v193 = vsel %vm190, %v192, %v188
    %v194 = vmul.f32 1.0, %v193
    %v195 = vtanh.pop %v175
    %197 = vrot.lane.b32.xlu0 %v149, 32
    %v198 = vpop.permute.xlu0 %197
    %v200 = vmul.f32 %v194, %v198
    %202 = vrot.lane.b32.xlu0 %v195, 64
    %v203 = vpop.permute.xlu0 %202
    %v205 = vmul.f32 %v194, %v203
    %207 = vrot.lane.b32.xlu0 %v205, 32
    %v208 = vpop.permute.xlu0 %207
    %v210 = vadd.f32 %v200, %v208
    %v211 = vtanh.pop %v210
    %213 = vrot.lane.b32.xlu0 %v211, 64
    %v214 = vpop.permute.xlu0 %213
    %v216 = vmul.f32 %v194, %v214
    %218 = vrot.lane.b32.xlu0 %v216, 32
    %v219 = vpop.permute.xlu0 %218
    %221 = vst.msk [vmem:[#allocation5] sm:$0xff] %vm151, %v219
    %s222 = scalar_lea.vmem [#allocation2], 8
    %v223 = vld [vmem:[%s222] sm:$0xff]
    %v224 = vsel %vm151, %v219, 0
    %226 = vmatpush.msra.mxu0 0.0
    %227 = vmatpush.msra.mxu0 0.0
    %228 = vmatpush.msra.mxu0 0.0
    %229 = vmatpush.msra.mxu0 0.0
    %230 = vmatpush.msra.mxu0 0.0
    %231 = vmatpush.msra.mxu0 0.0
    %232 = vmatpush.msra.mxu0 0.0
    %233 = vmatpush.msra.mxu0 0.0
    %234 = vmatpush.msra.mxu0 0.0
    %235 = vmatpush.msra.mxu0 0.0
    %236 = vmatpush.msra.mxu0 0.0
    %237 = vmatpush.msra.mxu0 0.0
    %238 = vmatpush.msra.mxu0 %v61
    %239 = vmatpush.msra.mxu0 %v60
    %240 = vmatpush.msra.mxu0 %v59
    %241 = vmatpush.msra.mxu0 %v58
    %242 = vmatmul.f32.gmra.mxu0 %v224
    %v243 = vpop.f32.mrf.mxu0
    %v244 = vadd.f32 0.0, %v243
    %245 = vdwg.mxu0
    %v246 = vadd.f32 %v223, %v244
    %v247 = vxor.u32 %v246, 2147483648
    %v248 = vmul.f32 %v247, 1.442695
    %v249 = vpow.pop %v248
    %v250 = vadd.f32 %v249, 1.0
    %v251 = vrcp.pop %v250
    %v252 = vmul.f32 %v250, %v251
    %v253 = vsub.f32 1.0, %v252
    %v254 = vmul.f32 %v251, %v253
    %v255 = vadd.f32 %v251, %v254
    %vm256 = vweird.f32 %v250
    %vm257 = vweird.f32 %v251
    %vm258 = vmor %vm256, %vm257
    %v259 = vsel %vm258, %v251, %v255
    %v260 = vand.u32 2147483647, %v250
    %vm261 = vcmp.eq.f32.partialorder %v260, 8.507059e+37
    %v262 = vand.u32 %v250, 2147483648
    %v263 = vor.u32 1.1754944e-38, %v262
    %v264 = vsel %vm261, %v263, %v259
    %v265 = vmul.f32 1.0, %v264
    %v266 = vtanh.pop %v246
    %v267 = vmul.f32 %v265, %v210
    %269 = vrot.lane.b32.xlu0 %v266, 64
    %v270 = vpop.permute.xlu0 %269
    %v272 = vmul.f32 %v265, %v270
    %274 = vrot.lane.b32.xlu0 %v272, 32
    %v275 = vpop.permute.xlu0 %274
    %v277 = vadd.f32 %v267, %v275
    %v278 = vtanh.pop %v277
    %280 = vrot.lane.b32.xlu0 %v278, 64
    %v281 = vpop.permute.xlu0 %280
    %v283 = vmul.f32 %v265, %v281
    %285 = vrot.lane.b32.xlu0 %v283, 32
    %v286 = vpop.permute.xlu0 %285
    %s288 = scalar_lea.vmem [#allocation5], 8
    %289 = vst.msk [vmem:[%s288] sm:$0xff] %vm151, %v286
    %s290 = scalar_lea.vmem [#allocation2], 16
    %v291 = vld [vmem:[%s290] sm:$0xff]
    %v292 = vsel %vm151, %v286, 0
    %294 = vmatpush.msra.mxu0 0.0
    %295 = vmatpush.msra.mxu0 0.0
    %296 = vmatpush.msra.mxu0 0.0
    %297 = vmatpush.msra.mxu0 0.0
    %298 = vmatpush.msra.mxu0 0.0
    %299 = vmatpush.msra.mxu0 0.0
    %300 = vmatpush.msra.mxu0 0.0
    %301 = vmatpush.msra.mxu0 0.0
    %302 = vmatpush.msra.mxu0 0.0
    %303 = vmatpush.msra.mxu0 0.0
    %304 = vmatpush.msra.mxu0 0.0
    %305 = vmatpush.msra.mxu0 0.0
    %306 = vmatpush.msra.mxu0 %v61
    %307 = vmatpush.msra.mxu0 %v60
    %308 = vmatpush.msra.mxu0 %v59
    %309 = vmatpush.msra.mxu0 %v58
    %310 = vmatmul.f32.gmra.mxu0 %v292
    %v311 = vpop.f32.mrf.mxu0
    %v312 = vadd.f32 0.0, %v311
    %313 = vdwg.mxu0
    %v314 = vadd.f32 %v291, %v312
    %v315 = vxor.u32 %v314, 2147483648
    %v316 = vmul.f32 %v315, 1.442695
    %v317 = vpow.pop %v316
    %v318 = vadd.f32 %v317, 1.0
    %v319 = vrcp.pop %v318
    %v320 = vmul.f32 %v318, %v319
    %v321 = vsub.f32 1.0, %v320
    %v322 = vmul.f32 %v319, %v321
    %v323 = vadd.f32 %v319, %v322
    %vm324 = vweird.f32 %v318
    %vm325 = vweird.f32 %v319
    %vm326 = vmor %vm324, %vm325
    %v327 = vsel %vm326, %v319, %v323
    %v328 = vand.u32 2147483647, %v318
    %vm329 = vcmp.eq.f32.partialorder %v328, 8.507059e+37
    %v330 = vand.u32 %v318, 2147483648
    %v331 = vor.u32 1.1754944e-38, %v330
    %v332 = vsel %vm329, %v331, %v327
    %v333 = vmul.f32 1.0, %v332
    %v334 = vtanh.pop %v314
    %v335 = vmul.f32 %v333, %v277
    %337 = vrot.lane.b32.xlu0 %v334, 64
    %v338 = vpop.permute.xlu0 %337
    %v340 = vmul.f32 %v333, %v338
    %342 = vrot.lane.b32.xlu0 %v340, 32
    %v343 = vpop.permute.xlu0 %342
    %v345 = vadd.f32 %v335, %v343
    %v346 = vtanh.pop %v345
    %348 = vrot.lane.b32.xlu0 %v346, 64
    %v349 = vpop.permute.xlu0 %348
    %v351 = vmul.f32 %v333, %v349
    %353 = vrot.lane.b32.xlu0 %v351, 32
    %v354 = vpop.permute.xlu0 %353
    %s356 = scalar_lea.vmem [#allocation5], 16
    %357 = vst.msk [vmem:[%s356] sm:$0xff] %vm151, %v354
    %s358 = scalar_lea.vmem [#allocation2], 24
    %v359 = vld [vmem:[%s358] sm:$0xff]
    %v360 = vsel %vm151, %v354, 0
    %362 = vmatpush.msra.mxu0 0.0
    %363 = vmatpush.msra.mxu0 0.0
    %364 = vmatpush.msra.mxu0 0.0
    %365 = vmatpush.msra.mxu0 0.0
    %366 = vmatpush.msra.mxu0 0.0
    %367 = vmatpush.msra.mxu0 0.0
    %368 = vmatpush.msra.mxu0 0.0
    %369 = vmatpush.msra.mxu0 0.0
    %370 = vmatpush.msra.mxu0 0.0
    %371 = vmatpush.msra.mxu0 0.0
    %372 = vmatpush.msra.mxu0 0.0
    %373 = vmatpush.msra.mxu0 0.0
    %374 = vmatpush.msra.mxu0 %v61
    %375 = vmatpush.msra.mxu0 %v60
    %376 = vmatpush.msra.mxu0 %v59
    %377 = vmatpush.msra.mxu0 %v58
    %378 = vmatmul.f32.gmra.mxu0 %v360
    %v379 = vpop.f32.mrf.mxu0
    %v380 = vadd.f32 0.0, %v379
    %381 = vdwg.mxu0
    %v382 = vadd.f32 %v359, %v380
    %v383 = vxor.u32 %v382, 2147483648
    %v384 = vmul.f32 %v383, 1.442695
    %v385 = vpow.pop %v384
    %v386 = vadd.f32 %v385, 1.0
    %v387 = vrcp.pop %v386
    %v388 = vmul.f32 %v386, %v387
    %v389 = vsub.f32 1.0, %v388
    %v390 = vmul.f32 %v387, %v389
    %v391 = vadd.f32 %v387, %v390
    %vm392 = vweird.f32 %v386
    %vm393 = vweird.f32 %v387
    %vm394 = vmor %vm392, %vm393
    %v395 = vsel %vm394, %v387, %v391
    %v396 = vand.u32 2147483647, %v386
    %vm397 = vcmp.eq.f32.partialorder %v396, 8.507059e+37
    %v398 = vand.u32 %v386, 2147483648
    %v399 = vor.u32 1.1754944e-38, %v398
    %v400 = vsel %vm397, %v399, %v395
    %v401 = vmul.f32 1.0, %v400
    %v402 = vtanh.pop %v382
    %v403 = vmul.f32 %v401, %v345
    %405 = vrot.lane.b32.xlu0 %v402, 64
    %v406 = vpop.permute.xlu0 %405
    %v408 = vmul.f32 %v401, %v406
    %410 = vrot.lane.b32.xlu0 %v408, 32
    %v411 = vpop.permute.xlu0 %410
    %v413 = vadd.f32 %v403, %v411
    %v414 = vtanh.pop %v413
    %416 = vrot.lane.b32.xlu0 %v414, 64
    %v417 = vpop.permute.xlu0 %416
    %v419 = vmul.f32 %v401, %v417
    %421 = vrot.lane.b32.xlu0 %v419, 32
    %v422 = vpop.permute.xlu0 %421
    %s424 = scalar_lea.vmem [#allocation5], 24
    %425 = vst.msk [vmem:[%s424] sm:$0xff] %vm151, %v422
    %s426 = scalar_lea.vmem [#allocation2], 32
    %v427 = vld [vmem:[%s426] sm:$0xff]
    %v428 = vsel %vm151, %v422, 0
    %430 = vmatpush.msra.mxu0 0.0
    %431 = vmatpush.msra.mxu0 0.0
    %432 = vmatpush.msra.mxu0 0.0
    %433 = vmatpush.msra.mxu0 0.0
    %434 = vmatpush.msra.mxu0 0.0
    %435 = vmatpush.msra.mxu0 0.0
    %436 = vmatpush.msra.mxu0 0.0
    %437 = vmatpush.msra.mxu0 0.0
    %438 = vmatpush.msra.mxu0 0.0
    %439 = vmatpush.msra.mxu0 0.0
    %440 = vmatpush.msra.mxu0 0.0
    %441 = vmatpush.msra.mxu0 0.0
    %442 = vmatpush.msra.mxu0 %v61
    %443 = vmatpush.msra.mxu0 %v60
    %444 = vmatpush.msra.mxu0 %v59
    %445 = vmatpush.msra.mxu0 %v58
    %446 = vmatmul.f32.gmra.mxu0 %v428
    %v447 = vpop.f32.mrf.mxu0
    %v448 = vadd.f32 0.0, %v447
    %449 = vdwg.mxu0
    %v450 = vadd.f32 %v427, %v448
    %v451 = vxor.u32 %v450, 2147483648
    %v452 = vmul.f32 %v451, 1.442695
    %v453 = vpow.pop %v452
    %v454 = vadd.f32 %v453, 1.0
    %v455 = vrcp.pop %v454
    %v456 = vmul.f32 %v454, %v455
    %v457 = vsub.f32 1.0, %v456
    %v458 = vmul.f32 %v455, %v457
    %v459 = vadd.f32 %v455, %v458
    %vm460 = vweird.f32 %v454
    %vm461 = vweird.f32 %v455
    %vm462 = vmor %vm460, %vm461
    %v463 = vsel %vm462, %v455, %v459
    %v464 = vand.u32 2147483647, %v454
    %vm465 = vcmp.eq.f32.partialorder %v464, 8.507059e+37
    %v466 = vand.u32 %v454, 2147483648
    %v467 = vor.u32 1.1754944e-38, %v466
    %v468 = vsel %vm465, %v467, %v463
    %v469 = vmul.f32 1.0, %v468
    %v470 = vtanh.pop %v450
    %v471 = vmul.f32 %v469, %v413
    %473 = vrot.lane.b32.xlu0 %v470, 64
    %v474 = vpop.permute.xlu0 %473
    %v476 = vmul.f32 %v469, %v474
    %478 = vrot.lane.b32.xlu0 %v476, 32
    %v479 = vpop.permute.xlu0 %478
    %v481 = vadd.f32 %v471, %v479
    %v482 = vtanh.pop %v481
    %484 = vrot.lane.b32.xlu0 %v482, 64
    %v485 = vpop.permute.xlu0 %484
    %v487 = vmul.f32 %v469, %v485
    %489 = vrot.lane.b32.xlu0 %v487, 32
    %v490 = vpop.permute.xlu0 %489
    %s492 = scalar_lea.vmem [#allocation5], 32
    %493 = vst.msk [vmem:[%s492] sm:$0xff] %vm151, %v490
    %s494 = scalar_lea.vmem [#allocation2], 40
    %v495 = vld [vmem:[%s494] sm:$0xff]
    %v496 = vsel %vm151, %v490, 0
    %498 = vmatpush.msra.mxu0 0.0
    %499 = vmatpush.msra.mxu0 0.0
    %500 = vmatpush.msra.mxu0 0.0
    %501 = vmatpush.msra.mxu0 0.0
    %502 = vmatpush.msra.mxu0 0.0
    %503 = vmatpush.msra.mxu0 0.0
    %504 = vmatpush.msra.mxu0 0.0
    %505 = vmatpush.msra.mxu0 0.0
    %506 = vmatpush.msra.mxu0 0.0
    %507 = vmatpush.msra.mxu0 0.0
    %508 = vmatpush.msra.mxu0 0.0
    %509 = vmatpush.msra.mxu0 0.0
    %510 = vmatpush.msra.mxu0 %v61
    %511 = vmatpush.msra.mxu0 %v60
    %512 = vmatpush.msra.mxu0 %v59
    %513 = vmatpush.msra.mxu0 %v58
    %514 = vmatmul.f32.gmra.mxu0 %v496
    %v515 = vpop.f32.mrf.mxu0
    %v516 = vadd.f32 0.0, %v515
    %517 = vdwg.mxu0
    %v518 = vadd.f32 %v495, %v516
    %v519 = vxor.u32 %v518, 2147483648
    %v520 = vmul.f32 %v519, 1.442695
    %v521 = vpow.pop %v520
    %v522 = vadd.f32 %v521, 1.0
    %v523 = vrcp.pop %v522
    %v524 = vmul.f32 %v522, %v523
    %v525 = vsub.f32 1.0, %v524
    %v526 = vmul.f32 %v523, %v525
    %v527 = vadd.f32 %v523, %v526
    %vm528 = vweird.f32 %v522
    %vm529 = vweird.f32 %v523
    %vm530 = vmor %vm528, %vm529
    %v531 = vsel %vm530, %v523, %v527
    %v532 = vand.u32 2147483647, %v522
    %vm533 = vcmp.eq.f32.partialorder %v532, 8.507059e+37
    %v534 = vand.u32 %v522, 2147483648
    %v535 = vor.u32 1.1754944e-38, %v534
    %v536 = vsel %vm533, %v535, %v531
    %v537 = vmul.f32 1.0, %v536
    %v538 = vtanh.pop %v518
    %v539 = vmul.f32 %v537, %v481
    %541 = vrot.lane.b32.xlu0 %v538, 64
    %v542 = vpop.permute.xlu0 %541
    %v544 = vmul.f32 %v537, %v542
    %546 = vrot.lane.b32.xlu0 %v544, 32
    %v547 = vpop.permute.xlu0 %546
    %v549 = vadd.f32 %v539, %v547
    %v550 = vtanh.pop %v549
    %552 = vrot.lane.b32.xlu0 %v550, 64
    %v553 = vpop.permute.xlu0 %552
    %v555 = vmul.f32 %v537, %v553
    %557 = vrot.lane.b32.xlu0 %v555, 32
    %v558 = vpop.permute.xlu0 %557
    %s560 = scalar_lea.vmem [#allocation5], 40
    %561 = vst.msk [vmem:[%s560] sm:$0xff] %vm151, %v558
    %s562 = scalar_lea.vmem [#allocation2], 48
    %v563 = vld [vmem:[%s562] sm:$0xff]
    %v564 = vsel %vm151, %v558, 0
    %566 = vmatpush.msra.mxu0 0.0
    %567 = vmatpush.msra.mxu0 0.0
    %568 = vmatpush.msra.mxu0 0.0
    %569 = vmatpush.msra.mxu0 0.0
    %570 = vmatpush.msra.mxu0 0.0
    %571 = vmatpush.msra.mxu0 0.0
    %572 = vmatpush.msra.mxu0 0.0
    %573 = vmatpush.msra.mxu0 0.0
    %574 = vmatpush.msra.mxu0 0.0
    %575 = vmatpush.msra.mxu0 0.0
    %576 = vmatpush.msra.mxu0 0.0
    %577 = vmatpush.msra.mxu0 0.0
    %578 = vmatpush.msra.mxu0 %v61
    %579 = vmatpush.msra.mxu0 %v60
    %580 = vmatpush.msra.mxu0 %v59
    %581 = vmatpush.msra.mxu0 %v58
    %582 = vmatmul.f32.gmra.mxu0 %v564
    %v583 = vpop.f32.mrf.mxu0
    %v584 = vadd.f32 0.0, %v583
    %585 = vdwg.mxu0
    %v586 = vadd.f32 %v563, %v584
    %v587 = vxor.u32 %v586, 2147483648
    %v588 = vmul.f32 %v587, 1.442695
    %v589 = vpow.pop %v588
    %v590 = vadd.f32 %v589, 1.0
    %v591 = vrcp.pop %v590
    %v592 = vmul.f32 %v590, %v591
    %v593 = vsub.f32 1.0, %v592
    %v594 = vmul.f32 %v591, %v593
    %v595 = vadd.f32 %v591, %v594
    %vm596 = vweird.f32 %v590
    %vm597 = vweird.f32 %v591
    %vm598 = vmor %vm596, %vm597
    %v599 = vsel %vm598, %v591, %v595
    %v600 = vand.u32 2147483647, %v590
    %vm601 = vcmp.eq.f32.partialorder %v600, 8.507059e+37
    %v602 = vand.u32 %v590, 2147483648
    %v603 = vor.u32 1.1754944e-38, %v602
    %v604 = vsel %vm601, %v603, %v599
    %v605 = vmul.f32 1.0, %v604
    %v606 = vtanh.pop %v586
    %v607 = vmul.f32 %v605, %v549
    %609 = vrot.lane.b32.xlu0 %v606, 64
    %v610 = vpop.permute.xlu0 %609
    %v612 = vmul.f32 %v605, %v610
    %614 = vrot.lane.b32.xlu0 %v612, 32
    %v615 = vpop.permute.xlu0 %614
    %v617 = vadd.f32 %v607, %v615
    %v618 = vtanh.pop %v617
    %620 = vrot.lane.b32.xlu0 %v618, 64
    %v621 = vpop.permute.xlu0 %620
    %v623 = vmul.f32 %v605, %v621
    %625 = vrot.lane.b32.xlu0 %v623, 32
    %v626 = vpop.permute.xlu0 %625
    %s628 = scalar_lea.vmem [#allocation5], 48
    %629 = vst.msk [vmem:[%s628] sm:$0xff] %vm151, %v626
    %s630 = scalar_lea.vmem [#allocation2], 56
    %v631 = vld [vmem:[%s630] sm:$0xff]
    %v632 = vsel %vm151, %v626, 0
    %634 = vmatpush.msra.mxu0 0.0
    %635 = vmatpush.msra.mxu0 0.0
    %636 = vmatpush.msra.mxu0 0.0
    %637 = vmatpush.msra.mxu0 0.0
    %638 = vmatpush.msra.mxu0 0.0
    %639 = vmatpush.msra.mxu0 0.0
    %640 = vmatpush.msra.mxu0 0.0
    %641 = vmatpush.msra.mxu0 0.0
    %642 = vmatpush.msra.mxu0 0.0
    %643 = vmatpush.msra.mxu0 0.0
    %644 = vmatpush.msra.mxu0 0.0
    %645 = vmatpush.msra.mxu0 0.0
    %646 = vmatpush.msra.mxu0 %v61
    %647 = vmatpush.msra.mxu0 %v60
    %648 = vmatpush.msra.mxu0 %v59
    %649 = vmatpush.msra.mxu0 %v58
    %650 = vmatmul.f32.gmra.mxu0 %v632
    %v651 = vpop.f32.mrf.mxu0
    %v652 = vadd.f32 0.0, %v651
    %653 = vdwg.mxu0
    %v654 = vadd.f32 %v631, %v652
    %v655 = vxor.u32 %v654, 2147483648
    %v656 = vmul.f32 %v655, 1.442695
    %v657 = vpow.pop %v656
    %v658 = vadd.f32 %v657, 1.0
    %v659 = vrcp.pop %v658
    %v660 = vmul.f32 %v658, %v659
    %v661 = vsub.f32 1.0, %v660
    %v662 = vmul.f32 %v659, %v661
    %v663 = vadd.f32 %v659, %v662
    %vm664 = vweird.f32 %v658
    %vm665 = vweird.f32 %v659
    %vm666 = vmor %vm664, %vm665
    %v667 = vsel %vm666, %v659, %v663
    %v668 = vand.u32 2147483647, %v658
    %vm669 = vcmp.eq.f32.partialorder %v668, 8.507059e+37
    %v670 = vand.u32 %v658, 2147483648
    %v671 = vor.u32 1.1754944e-38, %v670
    %v672 = vsel %vm669, %v671, %v667
    %v673 = vmul.f32 1.0, %v672
    %v674 = vtanh.pop %v654
    %v675 = vmul.f32 %v673, %v617
    %677 = vrot.lane.b32.xlu0 %v674, 64
    %v678 = vpop.permute.xlu0 %677
    %v680 = vmul.f32 %v673, %v678
    %682 = vrot.lane.b32.xlu0 %v680, 32
    %v683 = vpop.permute.xlu0 %682
    %v685 = vadd.f32 %v675, %v683
    %v686 = vtanh.pop %v685
    %688 = vrot.lane.b32.xlu0 %v686, 64
    %v689 = vpop.permute.xlu0 %688
    %v691 = vmul.f32 %v673, %v689
    %693 = vrot.lane.b32.xlu0 %v691, 32
    %v694 = vpop.permute.xlu0 %693
    %s696 = scalar_lea.vmem [#allocation5], 56
    %697 = vst.msk [vmem:[%s696] sm:$0xff] %vm151, %v694
    %698 = vst.msk [vmem:[#allocation3] sm:$0xff] %vm151, %v694
    %700 = vrot.lane.b32.xlu0 %v685, 96
    %v701 = vpop.permute.xlu0 %700
    %703 = vst.msk [vmem:[#allocation4] sm:$0xff] %vm151, %v701
    %v704 = vld [vmem:[%s4] sm:$0xff]
    %v705 = vld [vmem:[%s4 + $0x8] sm:$0xff]
    %v706 = vld [vmem:[%s4 + $0x10] sm:$0xff]
    %v707 = vld [vmem:[%s4 + $0x18] sm:$0xff]
    %v708 = vld [vmem:[#allocation6] sm:$0xff]
    %v709 = vld [vmem:[#allocation6 + $0x8] sm:$0xff]
    %v710 = vld [vmem:[#allocation6 + $0x10] sm:$0xff]
    %v711 = vld [vmem:[#allocation6 + $0x18] sm:$0xff]
    %v712 = vld [vmem:[%s6] sm:$0x1]
    %v713 = vld [vmem:[#allocation5] sm:$0xff]
    %v714 = vld [vmem:[#allocation5 + $0x8] sm:$0xff]
    %v715 = vld [vmem:[#allocation5 + $0x10] sm:$0xff]
    %v716 = vld [vmem:[#allocation5 + $0x18] sm:$0xff]
    %v717 = vld [vmem:[#allocation5 + $0x20] sm:$0xff]
    %v718 = vld [vmem:[#allocation5 + $0x28] sm:$0xff]
    %v719 = vld [vmem:[#allocation5 + $0x30] sm:$0xff]
    %v720 = vld [vmem:[#allocation5 + $0x38] sm:$0xff]
    %v722 = vperm.slane %v712, 0
    %v725 = vsel %vm151, %v713, 0
    %v728 = vsel %vm151, %v714, 0
    %v731 = vsel %vm151, %v715, 0
    %v734 = vsel %vm151, %v716, 0
    %v737 = vsel %vm151, %v717, 0
    %v740 = vsel %vm151, %v718, 0
    %v743 = vsel %vm151, %v719, 0
    %v746 = vsel %vm151, %v720, 0
    %748 = vmatpush.msra.mxu0 0.0
    %749 = vmatpush.msra.mxu0 0.0
    %750 = vmatpush.msra.mxu0 0.0
    %751 = vmatpush.msra.mxu0 0.0
    %752 = vmatpush.msra.mxu0 0.0
    %753 = vmatpush.msra.mxu0 0.0
    %754 = vmatpush.msra.mxu0 0.0
    %755 = vmatpush.msra.mxu0 0.0
    %756 = vmatpush.msra.mxu0 0.0
    %757 = vmatpush.msra.mxu0 0.0
    %758 = vmatpush.msra.mxu0 0.0
    %759 = vmatpush.msra.mxu0 0.0
    %760 = vmatpush.msra.mxu0 %v707
    %761 = vmatpush.msra.mxu0 %v706
    %762 = vmatpush.msra.mxu0 %v705
    %763 = vmatpush.msra.mxu0 %v704
    %764 = vmatmul.f32.gmra.mxu0 %v725
    %v765 = vpop.f32.mrf.mxu0
    %v766 = vadd.f32 %v722, %v765
    %767 = vmatmul.f32.gmra.mxu0 %v728
    %v768 = vpop.f32.mrf.mxu0
    %v769 = vadd.f32 %v722, %v768
    %770 = vmatmul.f32.gmra.mxu0 %v731
    %v771 = vpop.f32.mrf.mxu0
    %v772 = vadd.f32 %v722, %v771
    %773 = vmatmul.f32.gmra.mxu0 %v734
    %v774 = vpop.f32.mrf.mxu0
    %v775 = vadd.f32 %v722, %v774
    %776 = vmatmul.f32.gmra.mxu0 %v737
    %v777 = vpop.f32.mrf.mxu0
    %v778 = vadd.f32 %v722, %v777
    %779 = vmatmul.f32.gmra.mxu0 %v740
    %v780 = vpop.f32.mrf.mxu0
    %v781 = vadd.f32 %v722, %v780
    %782 = vmatmul.f32.gmra.mxu0 %v743
    %v783 = vpop.f32.mrf.mxu0
    %v784 = vadd.f32 %v722, %v783
    %785 = vmatmul.f32.gmra.mxu0 %v746
    %v786 = vpop.f32.mrf.mxu0
    %v787 = vadd.f32 %v722, %v786
    %788 = vdwg.mxu0
    %789 = vst [vmem:[#allocation2] sm:$0xff] %v766
    %790 = vst [vmem:[#allocation2 + $0x8] sm:$0xff] %v769
    %791 = vst [vmem:[#allocation2 + $0x10] sm:$0xff] %v772
    %792 = vst [vmem:[#allocation2 + $0x18] sm:$0xff] %v775
    %793 = vst [vmem:[#allocation2 + $0x20] sm:$0xff] %v778
    %794 = vst [vmem:[#allocation2 + $0x28] sm:$0xff] %v781
    %795 = vst [vmem:[#allocation2 + $0x30] sm:$0xff] %v784
    %796 = vst [vmem:[#allocation2 + $0x38] sm:$0xff] %v787
    %s797 = scalar_lea.vmem [#allocation3], 8
    %v798 = vld [vmem:[%s797] sm:$0xff]
    %s799 = scalar_lea.vmem [#allocation4], 8
    %v800 = vld [vmem:[%s799] sm:$0xff]
    %v801 = vld [vmem:[#allocation2] sm:$0xff]
    %v803 = vsel %vm151, %v798, 0
    %805 = vmatpush.msra.mxu0 0.0
    %806 = vmatpush.msra.mxu0 0.0
    %807 = vmatpush.msra.mxu0 0.0
    %808 = vmatpush.msra.mxu0 0.0
    %809 = vmatpush.msra.mxu0 0.0
    %810 = vmatpush.msra.mxu0 0.0
    %811 = vmatpush.msra.mxu0 0.0
    %812 = vmatpush.msra.mxu0 0.0
    %813 = vmatpush.msra.mxu0 0.0
    %814 = vmatpush.msra.mxu0 0.0
    %815 = vmatpush.msra.mxu0 0.0
    %816 = vmatpush.msra.mxu0 0.0
    %817 = vmatpush.msra.mxu0 %v711
    %818 = vmatpush.msra.mxu0 %v710
    %819 = vmatpush.msra.mxu0 %v709
    %820 = vmatpush.msra.mxu0 %v708
    %821 = vmatmul.f32.gmra.mxu0 %v803
    %v822 = vpop.f32.mrf.mxu0
    %v823 = vadd.f32 0.0, %v822
    %824 = vdwg.mxu0
    %v825 = vadd.f32 %v801, %v823
    %v826 = vxor.u32 %v825, 2147483648
    %v827 = vmul.f32 %v826, 1.442695
    %v828 = vpow.pop %v827
    %v829 = vadd.f32 %v828, 1.0
    %v830 = vrcp.pop %v829
    %v831 = vmul.f32 %v829, %v830
    %v832 = vsub.f32 1.0, %v831
    %v833 = vmul.f32 %v830, %v832
    %v834 = vadd.f32 %v830, %v833
    %vm835 = vweird.f32 %v829
    %vm836 = vweird.f32 %v830
    %vm837 = vmor %vm835, %vm836
    %v838 = vsel %vm837, %v830, %v834
    %v839 = vand.u32 2147483647, %v829
    %vm840 = vcmp.eq.f32.partialorder %v839, 8.507059e+37
    %v841 = vand.u32 %v829, 2147483648
    %v842 = vor.u32 1.1754944e-38, %v841
    %v843 = vsel %vm840, %v842, %v838
    %v844 = vmul.f32 1.0, %v843
    %v845 = vtanh.pop %v825
    %847 = vrot.lane.b32.xlu0 %v800, 32
    %v848 = vpop.permute.xlu0 %847
    %v850 = vmul.f32 %v844, %v848
    %852 = vrot.lane.b32.xlu0 %v845, 64
    %v853 = vpop.permute.xlu0 %852
    %v855 = vmul.f32 %v844, %v853
    %857 = vrot.lane.b32.xlu0 %v855, 32
    %v858 = vpop.permute.xlu0 %857
    %v860 = vadd.f32 %v850, %v858
    %v861 = vtanh.pop %v860
    %863 = vrot.lane.b32.xlu0 %v861, 64
    %v864 = vpop.permute.xlu0 %863
    %v866 = vmul.f32 %v844, %v864
    %868 = vrot.lane.b32.xlu0 %v866, 32
    %v869 = vpop.permute.xlu0 %868
    %871 = vst.msk [vmem:[%s7] sm:$0xff] %vm151, %v869
    %v872 = vld [vmem:[%s222] sm:$0xff]
    %v873 = vsel %vm151, %v869, 0
    %875 = vmatpush.msra.mxu0 0.0
    %876 = vmatpush.msra.mxu0 0.0
    %877 = vmatpush.msra.mxu0 0.0
    %878 = vmatpush.msra.mxu0 0.0
    %879 = vmatpush.msra.mxu0 0.0
    %880 = vmatpush.msra.mxu0 0.0
    %881 = vmatpush.msra.mxu0 0.0
    %882 = vmatpush.msra.mxu0 0.0
    %883 = vmatpush.msra.mxu0 0.0
    %884 = vmatpush.msra.mxu0 0.0
    %885 = vmatpush.msra.mxu0 0.0
    %886 = vmatpush.msra.mxu0 0.0
    %887 = vmatpush.msra.mxu0 %v711
    %888 = vmatpush.msra.mxu0 %v710
    %889 = vmatpush.msra.mxu0 %v709
    %890 = vmatpush.msra.mxu0 %v708
    %891 = vmatmul.f32.gmra.mxu0 %v873
    %v892 = vpop.f32.mrf.mxu0
    %v893 = vadd.f32 0.0, %v892
    %894 = vdwg.mxu0
    %v895 = vadd.f32 %v872, %v893
    %v896 = vxor.u32 %v895, 2147483648
    %v897 = vmul.f32 %v896, 1.442695
    %v898 = vpow.pop %v897
    %v899 = vadd.f32 %v898, 1.0
    %v900 = vrcp.pop %v899
    %v901 = vmul.f32 %v899, %v900
    %v902 = vsub.f32 1.0, %v901
    %v903 = vmul.f32 %v900, %v902
    %v904 = vadd.f32 %v900, %v903
    %vm905 = vweird.f32 %v899
    %vm906 = vweird.f32 %v900
    %vm907 = vmor %vm905, %vm906
    %v908 = vsel %vm907, %v900, %v904
    %v909 = vand.u32 2147483647, %v899
    %vm910 = vcmp.eq.f32.partialorder %v909, 8.507059e+37
    %v911 = vand.u32 %v899, 2147483648
    %v912 = vor.u32 1.1754944e-38, %v911
    %v913 = vsel %vm910, %v912, %v908
    %v914 = vmul.f32 1.0, %v913
    %v915 = vtanh.pop %v895
    %v916 = vmul.f32 %v914, %v860
    %918 = vrot.lane.b32.xlu0 %v915, 64
    %v919 = vpop.permute.xlu0 %918
    %v921 = vmul.f32 %v914, %v919
    %923 = vrot.lane.b32.xlu0 %v921, 32
    %v924 = vpop.permute.xlu0 %923
    %v926 = vadd.f32 %v916, %v924
    %v927 = vtanh.pop %v926
    %929 = vrot.lane.b32.xlu0 %v927, 64
    %v930 = vpop.permute.xlu0 %929
    %v932 = vmul.f32 %v914, %v930
    %934 = vrot.lane.b32.xlu0 %v932, 32
    %v935 = vpop.permute.xlu0 %934
    %s937 = scalar_lea.vmem %s7, 8
    %938 = vst.msk [vmem:[%s937] sm:$0xff] %vm151, %v935
    %v939 = vld [vmem:[%s290] sm:$0xff]
    %v940 = vsel %vm151, %v935, 0
    %942 = vmatpush.msra.mxu0 0.0
    %943 = vmatpush.msra.mxu0 0.0
    %944 = vmatpush.msra.mxu0 0.0
    %945 = vmatpush.msra.mxu0 0.0
    %946 = vmatpush.msra.mxu0 0.0
    %947 = vmatpush.msra.mxu0 0.0
    %948 = vmatpush.msra.mxu0 0.0
    %949 = vmatpush.msra.mxu0 0.0
    %950 = vmatpush.msra.mxu0 0.0
    %951 = vmatpush.msra.mxu0 0.0
    %952 = vmatpush.msra.mxu0 0.0
    %953 = vmatpush.msra.mxu0 0.0
    %954 = vmatpush.msra.mxu0 %v711
    %955 = vmatpush.msra.mxu0 %v710
    %956 = vmatpush.msra.mxu0 %v709
    %957 = vmatpush.msra.mxu0 %v708
    %958 = vmatmul.f32.gmra.mxu0 %v940
    %v959 = vpop.f32.mrf.mxu0
    %v960 = vadd.f32 0.0, %v959
    %961 = vdwg.mxu0
    %v962 = vadd.f32 %v939, %v960
    %v963 = vxor.u32 %v962, 2147483648
    %v964 = vmul.f32 %v963, 1.442695
    %v965 = vpow.pop %v964
    %v966 = vadd.f32 %v965, 1.0
    %v967 = vrcp.pop %v966
    %v968 = vmul.f32 %v966, %v967
    %v969 = vsub.f32 1.0, %v968
    %v970 = vmul.f32 %v967, %v969
    %v971 = vadd.f32 %v967, %v970
    %vm972 = vweird.f32 %v966
    %vm973 = vweird.f32 %v967
    %vm974 = vmor %vm972, %vm973
    %v975 = vsel %vm974, %v967, %v971
    %v976 = vand.u32 2147483647, %v966
    %vm977 = vcmp.eq.f32.partialorder %v976, 8.507059e+37
    %v978 = vand.u32 %v966, 2147483648
    %v979 = vor.u32 1.1754944e-38, %v978
    %v980 = vsel %vm977, %v979, %v975
    %v981 = vmul.f32 1.0, %v980
    %v982 = vtanh.pop %v962
    %v983 = vmul.f32 %v981, %v926
    %985 = vrot.lane.b32.xlu0 %v982, 64
    %v986 = vpop.permute.xlu0 %985
    %v988 = vmul.f32 %v981, %v986
    %990 = vrot.lane.b32.xlu0 %v988, 32
    %v991 = vpop.permute.xlu0 %990
    %v993 = vadd.f32 %v983, %v991
    %v994 = vtanh.pop %v993
    %996 = vrot.lane.b32.xlu0 %v994, 64
    %v997 = vpop.permute.xlu0 %996
    %v999 = vmul.f32 %v981, %v997
    %1001 = vrot.lane.b32.xlu0 %v999, 32
    %v1002 = vpop.permute.xlu0 %1001
    %s1004 = scalar_lea.vmem %s7, 16
    %1005 = vst.msk [vmem:[%s1004] sm:$0xff] %vm151, %v1002
    %v1006 = vld [vmem:[%s358] sm:$0xff]
    %v1007 = vsel %vm151, %v1002, 0
    %1009 = vmatpush.msra.mxu0 0.0
    %1010 = vmatpush.msra.mxu0 0.0
    %1011 = vmatpush.msra.mxu0 0.0
    %1012 = vmatpush.msra.mxu0 0.0
    %1013 = vmatpush.msra.mxu0 0.0
    %1014 = vmatpush.msra.mxu0 0.0
    %1015 = vmatpush.msra.mxu0 0.0
    %1016 = vmatpush.msra.mxu0 0.0
    %1017 = vmatpush.msra.mxu0 0.0
    %1018 = vmatpush.msra.mxu0 0.0
    %1019 = vmatpush.msra.mxu0 0.0
    %1020 = vmatpush.msra.mxu0 0.0
    %1021 = vmatpush.msra.mxu0 %v711
    %1022 = vmatpush.msra.mxu0 %v710
    %1023 = vmatpush.msra.mxu0 %v709
    %1024 = vmatpush.msra.mxu0 %v708
    %1025 = vmatmul.f32.gmra.mxu0 %v1007
    %v1026 = vpop.f32.mrf.mxu0
    %v1027 = vadd.f32 0.0, %v1026
    %1028 = vdwg.mxu0
    %v1029 = vadd.f32 %v1006, %v1027
    %v1030 = vxor.u32 %v1029, 2147483648
    %v1031 = vmul.f32 %v1030, 1.442695
    %v1032 = vpow.pop %v1031
    %v1033 = vadd.f32 %v1032, 1.0
    %v1034 = vrcp.pop %v1033
    %v1035 = vmul.f32 %v1033, %v1034
    %v1036 = vsub.f32 1.0, %v1035
    %v1037 = vmul.f32 %v1034, %v1036
    %v1038 = vadd.f32 %v1034, %v1037
    %vm1039 = vweird.f32 %v1033
    %vm1040 = vweird.f32 %v1034
    %vm1041 = vmor %vm1039, %vm1040
    %v1042 = vsel %vm1041, %v1034, %v1038
    %v1043 = vand.u32 2147483647, %v1033
    %vm1044 = vcmp.eq.f32.partialorder %v1043, 8.507059e+37
    %v1045 = vand.u32 %v1033, 2147483648
    %v1046 = vor.u32 1.1754944e-38, %v1045
    %v1047 = vsel %vm1044, %v1046, %v1042
    %v1048 = vmul.f32 1.0, %v1047
    %v1049 = vtanh.pop %v1029
    %v1050 = vmul.f32 %v1048, %v993
    %1052 = vrot.lane.b32.xlu0 %v1049, 64
    %v1053 = vpop.permute.xlu0 %1052
    %v1055 = vmul.f32 %v1048, %v1053
    %1057 = vrot.lane.b32.xlu0 %v1055, 32
    %v1058 = vpop.permute.xlu0 %1057
    %v1060 = vadd.f32 %v1050, %v1058
    %v1061 = vtanh.pop %v1060
    %1063 = vrot.lane.b32.xlu0 %v1061, 64
    %v1064 = vpop.permute.xlu0 %1063
    %v1066 = vmul.f32 %v1048, %v1064
    %1068 = vrot.lane.b32.xlu0 %v1066, 32
    %v1069 = vpop.permute.xlu0 %1068
    %s1071 = scalar_lea.vmem %s7, 24
    %1072 = vst.msk [vmem:[%s1071] sm:$0xff] %vm151, %v1069
    %v1073 = vld [vmem:[%s426] sm:$0xff]
    %v1074 = vsel %vm151, %v1069, 0
    %1076 = vmatpush.msra.mxu0 0.0
    %1077 = vmatpush.msra.mxu0 0.0
    %1078 = vmatpush.msra.mxu0 0.0
    %1079 = vmatpush.msra.mxu0 0.0
    %1080 = vmatpush.msra.mxu0 0.0
    %1081 = vmatpush.msra.mxu0 0.0
    %1082 = vmatpush.msra.mxu0 0.0
    %1083 = vmatpush.msra.mxu0 0.0
    %1084 = vmatpush.msra.mxu0 0.0
    %1085 = vmatpush.msra.mxu0 0.0
    %1086 = vmatpush.msra.mxu0 0.0
    %1087 = vmatpush.msra.mxu0 0.0
    %1088 = vmatpush.msra.mxu0 %v711
    %1089 = vmatpush.msra.mxu0 %v710
    %1090 = vmatpush.msra.mxu0 %v709
    %1091 = vmatpush.msra.mxu0 %v708
    %1092 = vmatmul.f32.gmra.mxu0 %v1074
    %v1093 = vpop.f32.mrf.mxu0
    %v1094 = vadd.f32 0.0, %v1093
    %1095 = vdwg.mxu0
    %v1096 = vadd.f32 %v1073, %v1094
    %v1097 = vxor.u32 %v1096, 2147483648
    %v1098 = vmul.f32 %v1097, 1.442695
    %v1099 = vpow.pop %v1098
    %v1100 = vadd.f32 %v1099, 1.0
    %v1101 = vrcp.pop %v1100
    %v1102 = vmul.f32 %v1100, %v1101
    %v1103 = vsub.f32 1.0, %v1102
    %v1104 = vmul.f32 %v1101, %v1103
    %v1105 = vadd.f32 %v1101, %v1104
    %vm1106 = vweird.f32 %v1100
    %vm1107 = vweird.f32 %v1101
    %vm1108 = vmor %vm1106, %vm1107
    %v1109 = vsel %vm1108, %v1101, %v1105
    %v1110 = vand.u32 2147483647, %v1100
    %vm1111 = vcmp.eq.f32.partialorder %v1110, 8.507059e+37
    %v1112 = vand.u32 %v1100, 2147483648
    %v1113 = vor.u32 1.1754944e-38, %v1112
    %v1114 = vsel %vm1111, %v1113, %v1109
    %v1115 = vmul.f32 1.0, %v1114
    %v1116 = vtanh.pop %v1096
    %v1117 = vmul.f32 %v1115, %v1060
    %1119 = vrot.lane.b32.xlu0 %v1116, 64
    %v1120 = vpop.permute.xlu0 %1119
    %v1122 = vmul.f32 %v1115, %v1120
    %1124 = vrot.lane.b32.xlu0 %v1122, 32
    %v1125 = vpop.permute.xlu0 %1124
    %v1127 = vadd.f32 %v1117, %v1125
    %v1128 = vtanh.pop %v1127
    %1130 = vrot.lane.b32.xlu0 %v1128, 64
    %v1131 = vpop.permute.xlu0 %1130
    %v1133 = vmul.f32 %v1115, %v1131
    %1135 = vrot.lane.b32.xlu0 %v1133, 32
    %v1136 = vpop.permute.xlu0 %1135
    %s1138 = scalar_lea.vmem %s7, 32
    %1139 = vst.msk [vmem:[%s1138] sm:$0xff] %vm151, %v1136
    %v1140 = vld [vmem:[%s494] sm:$0xff]
    %v1141 = vsel %vm151, %v1136, 0
    %1143 = vmatpush.msra.mxu0 0.0
    %1144 = vmatpush.msra.mxu0 0.0
    %1145 = vmatpush.msra.mxu0 0.0
    %1146 = vmatpush.msra.mxu0 0.0
    %1147 = vmatpush.msra.mxu0 0.0
    %1148 = vmatpush.msra.mxu0 0.0
    %1149 = vmatpush.msra.mxu0 0.0
    %1150 = vmatpush.msra.mxu0 0.0
    %1151 = vmatpush.msra.mxu0 0.0
    %1152 = vmatpush.msra.mxu0 0.0
    %1153 = vmatpush.msra.mxu0 0.0
    %1154 = vmatpush.msra.mxu0 0.0
    %1155 = vmatpush.msra.mxu0 %v711
    %1156 = vmatpush.msra.mxu0 %v710
    %1157 = vmatpush.msra.mxu0 %v709
    %1158 = vmatpush.msra.mxu0 %v708
    %1159 = vmatmul.f32.gmra.mxu0 %v1141
    %v1160 = vpop.f32.mrf.mxu0
    %v1161 = vadd.f32 0.0, %v1160
    %1162 = vdwg.mxu0
    %v1163 = vadd.f32 %v1140, %v1161
    %v1164 = vxor.u32 %v1163, 2147483648
    %v1165 = vmul.f32 %v1164, 1.442695
    %v1166 = vpow.pop %v1165
    %v1167 = vadd.f32 %v1166, 1.0
    %v1168 = vrcp.pop %v1167
    %v1169 = vmul.f32 %v1167, %v1168
    %v1170 = vsub.f32 1.0, %v1169
    %v1171 = vmul.f32 %v1168, %v1170
    %v1172 = vadd.f32 %v1168, %v1171
    %vm1173 = vweird.f32 %v1167
    %vm1174 = vweird.f32 %v1168
    %vm1175 = vmor %vm1173, %vm1174
    %v1176 = vsel %vm1175, %v1168, %v1172
    %v1177 = vand.u32 2147483647, %v1167
    %vm1178 = vcmp.eq.f32.partialorder %v1177, 8.507059e+37
    %v1179 = vand.u32 %v1167, 2147483648
    %v1180 = vor.u32 1.1754944e-38, %v1179
    %v1181 = vsel %vm1178, %v1180, %v1176
    %v1182 = vmul.f32 1.0, %v1181
    %v1183 = vtanh.pop %v1163
    %v1184 = vmul.f32 %v1182, %v1127
    %1186 = vrot.lane.b32.xlu0 %v1183, 64
    %v1187 = vpop.permute.xlu0 %1186
    %v1189 = vmul.f32 %v1182, %v1187
    %1191 = vrot.lane.b32.xlu0 %v1189, 32
    %v1192 = vpop.permute.xlu0 %1191
    %v1194 = vadd.f32 %v1184, %v1192
    %v1195 = vtanh.pop %v1194
    %1197 = vrot.lane.b32.xlu0 %v1195, 64
    %v1198 = vpop.permute.xlu0 %1197
    %v1200 = vmul.f32 %v1182, %v1198
    %1202 = vrot.lane.b32.xlu0 %v1200, 32
    %v1203 = vpop.permute.xlu0 %1202
    %s1205 = scalar_lea.vmem %s7, 40
    %1206 = vst.msk [vmem:[%s1205] sm:$0xff] %vm151, %v1203
    %v1207 = vld [vmem:[%s562] sm:$0xff]
    %v1208 = vsel %vm151, %v1203, 0
    %1210 = vmatpush.msra.mxu0 0.0
    %1211 = vmatpush.msra.mxu0 0.0
    %1212 = vmatpush.msra.mxu0 0.0
    %1213 = vmatpush.msra.mxu0 0.0
    %1214 = vmatpush.msra.mxu0 0.0
    %1215 = vmatpush.msra.mxu0 0.0
    %1216 = vmatpush.msra.mxu0 0.0
    %1217 = vmatpush.msra.mxu0 0.0
    %1218 = vmatpush.msra.mxu0 0.0
    %1219 = vmatpush.msra.mxu0 0.0
    %1220 = vmatpush.msra.mxu0 0.0
    %1221 = vmatpush.msra.mxu0 0.0
    %1222 = vmatpush.msra.mxu0 %v711
    %1223 = vmatpush.msra.mxu0 %v710
    %1224 = vmatpush.msra.mxu0 %v709
    %1225 = vmatpush.msra.mxu0 %v708
    %1226 = vmatmul.f32.gmra.mxu0 %v1208
    %v1227 = vpop.f32.mrf.mxu0
    %v1228 = vadd.f32 0.0, %v1227
    %1229 = vdwg.mxu0
    %v1230 = vadd.f32 %v1207, %v1228
    %v1231 = vxor.u32 %v1230, 2147483648
    %v1232 = vmul.f32 %v1231, 1.442695
    %v1233 = vpow.pop %v1232
    %v1234 = vadd.f32 %v1233, 1.0
    %v1235 = vrcp.pop %v1234
    %v1236 = vmul.f32 %v1234, %v1235
    %v1237 = vsub.f32 1.0, %v1236
    %v1238 = vmul.f32 %v1235, %v1237
    %v1239 = vadd.f32 %v1235, %v1238
    %vm1240 = vweird.f32 %v1234
    %vm1241 = vweird.f32 %v1235
    %vm1242 = vmor %vm1240, %vm1241
    %v1243 = vsel %vm1242, %v1235, %v1239
    %v1244 = vand.u32 2147483647, %v1234
    %vm1245 = vcmp.eq.f32.partialorder %v1244, 8.507059e+37
    %v1246 = vand.u32 %v1234, 2147483648
    %v1247 = vor.u32 1.1754944e-38, %v1246
    %v1248 = vsel %vm1245, %v1247, %v1243
    %v1249 = vmul.f32 1.0, %v1248
    %v1250 = vtanh.pop %v1230
    %v1251 = vmul.f32 %v1249, %v1194
    %1253 = vrot.lane.b32.xlu0 %v1250, 64
    %v1254 = vpop.permute.xlu0 %1253
    %v1256 = vmul.f32 %v1249, %v1254
    %1258 = vrot.lane.b32.xlu0 %v1256, 32
    %v1259 = vpop.permute.xlu0 %1258
    %v1261 = vadd.f32 %v1251, %v1259
    %v1262 = vtanh.pop %v1261
    %1264 = vrot.lane.b32.xlu0 %v1262, 64
    %v1265 = vpop.permute.xlu0 %1264
    %v1267 = vmul.f32 %v1249, %v1265
    %1269 = vrot.lane.b32.xlu0 %v1267, 32
    %v1270 = vpop.permute.xlu0 %1269
    %s1272 = scalar_lea.vmem %s7, 48
    %1273 = vst.msk [vmem:[%s1272] sm:$0xff] %vm151, %v1270
    %v1274 = vld [vmem:[%s630] sm:$0xff]
    %v1275 = vsel %vm151, %v1270, 0
    %1277 = vmatpush.msra.mxu0 0.0
    %1278 = vmatpush.msra.mxu0 0.0
    %1279 = vmatpush.msra.mxu0 0.0
    %1280 = vmatpush.msra.mxu0 0.0
    %1281 = vmatpush.msra.mxu0 0.0
    %1282 = vmatpush.msra.mxu0 0.0
    %1283 = vmatpush.msra.mxu0 0.0
    %1284 = vmatpush.msra.mxu0 0.0
    %1285 = vmatpush.msra.mxu0 0.0
    %1286 = vmatpush.msra.mxu0 0.0
    %1287 = vmatpush.msra.mxu0 0.0
    %1288 = vmatpush.msra.mxu0 0.0
    %1289 = vmatpush.msra.mxu0 %v711
    %1290 = vmatpush.msra.mxu0 %v710
    %1291 = vmatpush.msra.mxu0 %v709
    %1292 = vmatpush.msra.mxu0 %v708
    %1293 = vmatmul.f32.gmra.mxu0 %v1275
    %v1294 = vpop.f32.mrf.mxu0
    %v1295 = vadd.f32 0.0, %v1294
    %1296 = vdwg.mxu0
    %v1297 = vadd.f32 %v1274, %v1295
    %v1298 = vxor.u32 %v1297, 2147483648
    %v1299 = vmul.f32 %v1298, 1.442695
    %v1300 = vpow.pop %v1299
    %v1301 = vadd.f32 %v1300, 1.0
    %v1302 = vrcp.pop %v1301
    %v1303 = vmul.f32 %v1301, %v1302
    %v1304 = vsub.f32 1.0, %v1303
    %v1305 = vmul.f32 %v1302, %v1304
    %v1306 = vadd.f32 %v1302, %v1305
    %vm1307 = vweird.f32 %v1301
    %vm1308 = vweird.f32 %v1302
    %vm1309 = vmor %vm1307, %vm1308
    %v1310 = vsel %vm1309, %v1302, %v1306
    %v1311 = vand.u32 2147483647, %v1301
    %vm1312 = vcmp.eq.f32.partialorder %v1311, 8.507059e+37
    %v1313 = vand.u32 %v1301, 2147483648
    %v1314 = vor.u32 1.1754944e-38, %v1313
    %v1315 = vsel %vm1312, %v1314, %v1310
    %v1316 = vmul.f32 1.0, %v1315
    %v1317 = vtanh.pop %v1297
    %v1318 = vmul.f32 %v1316, %v1261
    %1320 = vrot.lane.b32.xlu0 %v1317, 64
    %v1321 = vpop.permute.xlu0 %1320
    %v1323 = vmul.f32 %v1316, %v1321
    %1325 = vrot.lane.b32.xlu0 %v1323, 32
    %v1326 = vpop.permute.xlu0 %1325
    %v1328 = vadd.f32 %v1318, %v1326
    %v1329 = vtanh.pop %v1328
    %1331 = vrot.lane.b32.xlu0 %v1329, 64
    %v1332 = vpop.permute.xlu0 %1331
    %v1334 = vmul.f32 %v1316, %v1332
    %1336 = vrot.lane.b32.xlu0 %v1334, 32
    %v1337 = vpop.permute.xlu0 %1336
    %s1339 = scalar_lea.vmem %s7, 56
    %1340 = vst.msk [vmem:[%s1339] sm:$0xff] %vm151, %v1337
    %1341 = vst.msk [vmem:[%s797] sm:$0xff] %vm151, %v1337
    %1343 = vrot.lane.b32.xlu0 %v1328, 96
    %v1344 = vpop.permute.xlu0 %1343
    %1346 = vst.msk [vmem:[%s799] sm:$0xff] %vm151, %v1344
    // Predicated region
    $region38: #{tpu_custom_call.1} parent=1 // pred_check
      %p1347 = pneg %p47
    $region39: #{tpu_custom_call.1} parent=1 // pred_check_branch
      %1349 = sbr.rel (%p1347) target = $region41
    $region40: #{tpu_custom_call.1} parent=1 // pred_region
      %v1350 = vld [vmem:[#allocation3] sm:$0xff]
      %v1351 = vld [vmem:[#allocation3 + $0x8] sm:$0xff]
      %1352 = vst.msk [vmem:[#allocation9] sm:$0xff] %vm151, %v1350
      %1353 = vst.msk [vmem:[#allocation9 + $0x8] sm:$0xff] %vm151, %v1351
      %v1354 = vld [vmem:[#allocation4] sm:$0xff]
      %v1355 = vld [vmem:[#allocation4 + $0x8] sm:$0xff]
      %1356 = vst.msk [vmem:[#allocation10] sm:$0xff] %vm151, %v1354
      %1357 = vst.msk [vmem:[#allocation10 + $0x8] sm:$0xff] %vm151, %v1355
    $region41: #{tpu_custom_call.1} parent=1 // pred_fallthru
      _
    // Predicated region
    $region42: #{tpu_custom_call.1} parent=1 // pred_check
      _
    $region43: #{tpu_custom_call.1} parent=1 // pred_check_branch
      %1359 = sbr.rel (0) target = $region45
    $region44: #{tpu_custom_call.1} parent=1 // pred_region
      _
    $region45: #{tpu_custom_call.1} parent=1 // pred_fallthru
      _
    // Predicated region
    $region46: #{tpu_custom_call.1} parent=1 // pred_check
      _
    $region47: #{tpu_custom_call.1} parent=1 // pred_check_branch
      %1361 = sbr.rel (0) target = $region49
    $region48: #{tpu_custom_call.1} parent=1 // pred_region
      %1363 = vsyncadd [#allocation8], 0
      %s1364 = sshll.u32 [#allocation9], 4
      %s1365 = int_to_ptr.vmem [resolvable:$true] %s1364
      %s1366 = sshll.u32 %s8, 4
      %s1367 = int_to_ptr.hbm [resolvable:$true] %s1366
      %1372 = dma.vmem_to_hbm [thread:$0]  %s1365, 256, %s1367, [#allocation8], 128, 128, 8
    $region49: #{tpu_custom_call.1} parent=1 // pred_fallthru
      _
    // Predicated region
    $region50: #{tpu_custom_call.1} parent=1 // pred_check
      _
    $region51: #{tpu_custom_call.1} parent=1 // pred_check_branch
      %1374 = sbr.rel (0) target = $region53
    $region52: #{tpu_custom_call.1} parent=1 // pred_region
      %1376 = vsyncadd [#allocation11], 0
      %s1377 = sshll.u32 [#allocation10], 4
      %s1378 = int_to_ptr.vmem [resolvable:$true] %s1377
      %s1379 = sshll.u32 %s9, 4
      %s1380 = int_to_ptr.hbm [resolvable:$true] %s1379
      %1385 = dma.vmem_to_hbm [thread:$0]  %s1378, 256, %s1380, [#allocation11], 128, 128, 8
    $region53: #{tpu_custom_call.1} parent=1 // pred_fallthru
      _
    // Predicated region
    $region54: #{tpu_custom_call.1} parent=1 // pred_check
      _
    $region55: #{tpu_custom_call.1} parent=1 // pred_check_branch
      %1387 = sbr.rel (0) target = $region57
    $region56: #{tpu_custom_call.1} parent=1 // pred_region
      _
    $region57: #{tpu_custom_call.1} parent=1 // pred_fallthru
      _
    // Predicated region
    $region58: #{tpu_custom_call.1} parent=1 // pred_check
      _
    $region59: #{tpu_custom_call.1} parent=1 // pred_check_branch
      %1389 = sbr.rel (0) target = $region61
    $region60: #{tpu_custom_call.1} parent=1 // pred_region
      %1391 = dma.done [#allocation8], 256
    $region61: #{tpu_custom_call.1} parent=1 // pred_fallthru
      _
    // Predicated region
    $region62: #{tpu_custom_call.1} parent=1 // pred_check
      _
    $region63: #{tpu_custom_call.1} parent=1 // pred_check_branch
      %1393 = sbr.rel (0) target = $region65
    $region64: #{tpu_custom_call.1} parent=1 // pred_region
      %1395 = dma.done [#allocation11], 256
    $region65: #{tpu_custom_call.1} parent=1 // pred_fallthru
      _
    %1396 = vsyncpa [#allocation7], 1
    %1397 = vsyncpa [#allocation8], 1
    %1398 = vsyncpa [#allocation11], 1

</llo_original>
